<compile_context>
chip_gen: v7x
topology: tpu7x:2x2x1
jax: 0.10.0
libtpu: 0.0.40
codegen_flags: <defaults>
</compile_context>

<pallas_src>
import functools

import jax
import jax.numpy as jnp
from jax.experimental import pallas as pl
from jax.experimental.pallas import tpu as pltpu


# ----------------------------- helpers --------------------------------------

def _pick_tile(m):
    """Largest lane-dense tile (<=256, multiple of 128) dividing m, else m."""
    for t in (256, 128):
        if m % t == 0:
            return t
    return m


# ----------------------------- Pallas kernels -------------------------------

def _pconv3x3_kernel(x_ref, w_ref, b_ref, mask_ref, o_ref, *, H, W):
    """3x3 / stride 1 / pad 1 conv from a flattened H-padded image (f32).

    x_ref    : (1, C, L)     L = (H+2)*W + 2  (1-element guards front/back)
    w_ref    : (Nout, 9*C)   K index = tap*C + c  (tap = i*3 + j)
    b_ref    : (Nout, 1)
    mask_ref : (2, M)        [0]=left_ok, [1]=right_ok (precomputed, hoisted)
    o_ref    : (1, Nout, M)  pixels-last, lane-dense output
    """
    M = H * W
    xb = x_ref[0]                                   # (C, L) in VMEM
    left_ok = mask_ref[0:1, :]                      # (1, M)
    right_ok = mask_ref[1:2, :]                     # (1, M)

    taps = []
    for i in range(3):
        for j in range(3):
            start = i * W + j
            xt = xb[:, start:start + M]             # (C, M) shifted slice
            if j == 0:
                xt = xt * left_ok
            elif j == 2:
                xt = xt * right_ok
            taps.append(xt)
    stacked = jnp.concatenate(taps, axis=0)         # (9*C, M), row = tap*C + c

    acc = jnp.dot(w_ref[...], stacked,              # single K=9*C MXU dot, f32
                  preferred_element_type=jnp.float32)
    o_ref[0] = acc + b_ref[...]


def _dcn_bn_relu_res_kernel(xoff_ref, w_ref, scale_ref, shift_ref,
                            res_ref, o_ref):
    """Fused: dconv matmul -> BN(affine, folded) -> ReLU -> +residual.

    xoff_ref : (1, C*9, m) bf16  pre-blended deformable samples, rows (c, tap)
    w_ref    : (C, C*9)    bf16  dconv weight
    scale/shift : (C, 1)   f32   folded BatchNorm (inference / running stats)
    res_ref  : (1, C, m)   f32   residual (= x, pixels-last)
    o_ref    : (1, C, m)   bf16
    """
    acc = jnp.dot(w_ref[...], xoff_ref[0],
                  preferred_element_type=jnp.float32)            # (C, m) f32
    y = acc * scale_ref[...] + shift_ref[...]                    # BN
    o_ref[0] = (jnp.maximum(y, 0.0) + res_ref[0]).astype(o_ref.dtype)


def _matmul_bias_kernel(a_ref, w_ref, b_ref, o_ref):
    """(Nout, K) @ (K, m) + bias; bf16 operands, f32 accumulation/output."""
    acc = jnp.dot(w_ref[...], a_ref[...],
                  preferred_element_type=jnp.float32)
    o_ref[...] = acc + b_ref[...]


# ----------------------------- kernel wrappers -------------------------------

def pallas_pconv3x3(x_nchw, w, b):
    """3x3 conv, stride 1, pad 1, f32.  x:(B,C,H,W), w:(Nout,C,3,3), b:(Nout,).
    Returns (B, Nout, H*W)."""
    B, C, H, W = x_nchw.shape
    Nout = w.shape[0]
    M = H * W
    L = (H + 2) * W + 2

    # H-pad, flatten spatial, add 1-element guards (no 9x im2col in HBM).
    xh = jnp.pad(x_nchw, ((0, 0), (0, 0), (1, 1), (0, 0))).reshape(B, C, (H + 2) * W)
    xf = jnp.pad(xh, ((0, 0), (0, 0), (1, 1)))                   # (B, C, L)
    # weight with K index = tap*C + c, kept f32 (offsets feed floor/clip).
    w_flat = jnp.transpose(w, (0, 2, 3, 1)).reshape(Nout, 9 * C)
    bias = b.reshape(Nout, 1)
    # hoisted border masks (computed once, tiny (2, M) input)
    col = jnp.arange(M, dtype=jnp.int32) % W
    masks = jnp.stack([(col != 0), (col != W - 1)]).astype(jnp.float32)

    # TODO(synk): whole image per batch in VMEM; very large H*W would need a
    # halo-tiled pixel grid instead of a single per-image block.
    return pl.pallas_call(
        functools.partial(_pconv3x3_kernel, H=H, W=W),
        out_shape=jax.ShapeDtypeStruct((B, Nout, M), jnp.float32),
        grid=(B,),
        in_specs=[
            pl.BlockSpec((1, C, L), lambda bi: (bi, 0, 0)),
            pl.BlockSpec((Nout, 9 * C), lambda bi: (0, 0)),
            pl.BlockSpec((Nout, 1), lambda bi: (0, 0)),
            pl.BlockSpec((2, M), lambda bi: (0, 0)),
        ],
        out_specs=pl.BlockSpec((1, Nout, M), lambda bi: (bi, 0, 0)),
        compiler_params=pltpu.CompilerParams(dimension_semantics=("parallel",)),
    )(xf, w_flat, bias, masks)


def pallas_dconv_bn_relu_res(x_off, w_bf16, scale, shift, res):
    """Fused dconv + BN + ReLU + residual.
    x_off:(B,C*9,M) bf16, w:(C,C*9) bf16, scale/shift:(C,), res:(B,C,M) f32.
    Returns z:(B,C,M) bf16."""
    B, CK, M = x_off.shape
    C = res.shape[1]
    tile_m = _pick_tile(M)

    return pl.pallas_call(
        _dcn_bn_relu_res_kernel,
        out_shape=jax.ShapeDtypeStruct((B, C, M), jnp.bfloat16),
        grid=(B, M // tile_m),
        in_specs=[
            pl.BlockSpec((1, CK, tile_m), lambda bi, mi: (bi, 0, mi)),
            pl.BlockSpec((C, CK), lambda bi, mi: (0, 0)),
            pl.BlockSpec((C, 1), lambda bi, mi: (0, 0)),
            pl.BlockSpec((C, 1), lambda bi, mi: (0, 0)),
            pl.BlockSpec((1, C, tile_m), lambda bi, mi: (bi, 0, mi)),
        ],
        out_specs=pl.BlockSpec((1, C, tile_m), lambda bi, mi: (bi, 0, mi)),
        compiler_params=pltpu.CompilerParams(
            dimension_semantics=("parallel", "parallel")),
    )(x_off, w_bf16, scale.reshape(C, 1), shift.reshape(C, 1), res)


def pallas_matmul_bias(a, w_bf16, b):
    """a:(K, Mtot) bf16, w:(Nout,K) bf16, b:(Nout,) f32 -> (Nout, Mtot) f32.
    Mtot = B*Ho*Wo (batch collapsed into lanes -> lane-dense output)."""
    K, Mtot = a.shape
    Nout = w_bf16.shape[0]
    tile = _pick_tile(Mtot)
    # TODO(synk): for v7x megacore a >=2-step parallel grid would be better
    # when Mtot == 128 (single lane tile); irrelevant on v5e/v6e (1 TC).
    return pl.pallas_call(
        _matmul_bias_kernel,
        out_shape=jax.ShapeDtypeStruct((Nout, Mtot), jnp.float32),
        grid=(Mtot // tile,),
        in_specs=[
            pl.BlockSpec((K, tile), lambda mi: (0, mi)),
            pl.BlockSpec((Nout, K), lambda mi: (0, 0)),
            pl.BlockSpec((Nout, 1), lambda mi: (0, 0)),
        ],
        out_specs=pl.BlockSpec((Nout, tile), lambda mi: (0, mi)),
        compiler_params=pltpu.CompilerParams(dimension_semantics=("parallel",)),
    )(a, w_bf16, b.reshape(Nout, 1))


# ------------------------------- JAX glue ------------------------------------

def _deform_sample_xoff(x_nchw, offset, ks, pad):
    """Deformable bilinear sampling (DeformConv2d semantics, modulation=False).

    Gathers the 4 corners and blends them in XLA (the FMA blend fuses with the
    gathers), returning a single pre-blended x_off:(B, C*N, H*W) in bf16 --
    the only large input to the fused Pallas kernel.
    """
    # TODO(synk): the data-dependent bilinear gather stays in plain JAX
    # (no clean in-kernel dynamic-gather / manual-DMA path attempted here).
    B, C, H, W = x_nchw.shape
    N = ks * ks
    Hp, Wp = H + 2 * pad, W + 2 * pad
    xp = jnp.pad(x_nchw, ((0, 0), (0, 0), (pad, pad), (pad, pad)))
    x_flat = xp.reshape(B, C, Hp * Wp)

    off_x = offset[:, :N]                                        # (B, N, H, W)
    off_y = offset[:, N:]

    r = (ks - 1) // 2
    pnx, pny = jnp.meshgrid(jnp.arange(-r, r + 1), jnp.arange(-r, r + 1),
                            indexing="ij")
    pnx = pnx.reshape(-1).astype(jnp.float32)
    pny = pny.reshape(-1).astype(jnp.float32)
    p0x = jnp.arange(1, H + 1, dtype=jnp.float32)                # stride 1
    p0y = jnp.arange(1, W + 1, dtype=jnp.float32)

    px = off_x + pnx[None, :, None, None] + p0x[None, None, :, None]
    py = off_y + pny[None, :, None, None] + p0y[None, None, None, :]

    q_lt_x = jnp.clip(jnp.floor(px), 0, Hp - 1)
    q_lt_y = jnp.clip(jnp.floor(py), 0, Wp - 1)
    q_rb_x = jnp.clip(jnp.floor(px) + 1, 0, Hp - 1)
    q_rb_y = jnp.clip(jnp.floor(py) + 1, 0, Wp - 1)

    pxc = jnp.clip(px, 0, Hp - 1)
    pyc = jnp.clip(py, 0, Wp - 1)

    g_lt = (1 + (q_lt_x - pxc)) * (1 + (q_lt_y - pyc))
    g_rb = (1 - (q_rb_x - pxc)) * (1 - (q_rb_y - pyc))
    g_lb = (1 + (q_lt_x - pxc)) * (1 - (q_rb_y - pyc))
    g_rt = (1 - (q_rb_x - pxc)) * (1 + (q_lt_y - pyc))

    M = H * W

    def gather(qx, qy):
        idx = (qx * Wp + qy).astype(jnp.int32).reshape(B, N * M)
        g = jax.vmap(lambda xf, ix: jnp.take(xf, ix, axis=1))(x_flat, idx)
        return g.reshape(B, C, N, M)                             # (B, C, N, M)

    def wts(g):                                                  # (B,N,H,W) -> (B,1,N,M)
        return g.reshape(B, 1, N, M)

    x_off = (wts(g_lt) * gather(q_lt_x, q_lt_y)
             + wts(g_rb) * gather(q_rb_x, q_rb_y)
             + wts(g_lb) * gather(q_lt_x, q_rb_y)
             + wts(g_rt) * gather(q_rb_x, q_lt_y))               # (B, C, N, M) f32
    return x_off.reshape(B, C * N, M).astype(jnp.bfloat16)       # rows (c, tap)


def _conv2_taps_lane_dense(z_nchw, kh, kw, stride, pad):
    """Conv2 tap stack, bf16, batch collapsed into the lane axis:
    (C*kh*kw, B*Ho*Wo), K index = c*kh*kw + i*kw + j."""
    # TODO(synk): tap extraction stays at the XLA level; a halo-tiled
    # in-kernel strided conv would remove this kh*kw blow-up entirely.
    B, C, H, W = z_nchw.shape
    zp = jnp.pad(z_nchw, ((0, 0), (0, 0), (pad, pad), (pad, pad)))
    Ho = (H + 2 * pad - kh) // stride + 1
    Wo = (W + 2 * pad - kw) // stride + 1
    taps = [zp[:, :, i:i + stride * (Ho - 1) + 1:stride,
                  j:j + stride * (Wo - 1) + 1:stride]
            for i in range(kh) for j in range(kw)]
    a = jnp.stack(taps, axis=2)                                  # (B,C,kh*kw,Ho,Wo)
    a = jnp.transpose(a, (1, 2, 0, 3, 4)).reshape(C * kh * kw, B * Ho * Wo)
    return a, Ho, Wo


# ------------------------------ BasicBlock -----------------------------------

def init_params(key, in_channels, out_channels, kernel_size):
    ks = 3
    N = ks * ks
    k = jax.random.split(key, 9)
    return {
        "p_conv_w": 0.05 * jax.random.normal(k[0], (2 * N, in_channels, 3, 3), jnp.float32),
        "p_conv_b": 0.05 * jax.random.normal(k[1], (2 * N,), jnp.float32),
        "dconv_w": 0.2 * jax.random.normal(k[2], (in_channels, in_channels, ks, ks), jnp.float32),
        "bn_gamma": 1.0 + 0.1 * jax.random.normal(k[3], (in_channels,), jnp.float32),
        "bn_beta": 0.1 * jax.random.normal(k[4], (in_channels,), jnp.float32),
        "bn_mean": 0.1 * jax.random.normal(k[5], (in_channels,), jnp.float32),
        "bn_var": jnp.abs(1.0 + 0.1 * jax.random.normal(k[6], (in_channels,), jnp.float32)),
        "conv2_w": 0.2 * jax.random.normal(
            k[7], (out_channels, in_channels, kernel_size, kernel_size), jnp.float32),
        "conv2_b": 0.1 * jax.random.normal(k[8], (out_channels,), jnp.float32),
    }


def basic_block_forward(x, params, kernel_size, stride, padding):
    B, C, H, W = x.shape
    ks = 3
    N = ks * ks
    eps = 1e-5
    M = H * W

    # ---- dcn_conv1.p_conv : in-kernel 3x3 conv (f32) -> offsets (B,2N,H*W) ----
    off = pallas_pconv3x3(x, params["p_conv_w"], params["p_conv_b"])
    offset = off.reshape(B, 2 * N, H, W)                         # NCHW, no transpose

    # ---- deformable bilinear sampling + blend (XLA) -> single bf16 x_off ----
    x_off = _deform_sample_xoff(x, offset, ks, pad=1)            # (B, C*9, M) bf16

    # ---- fused: dconv matmul + BN(eval) + ReLU + residual -> z bf16 ----
    # NOTE: BatchNorm is folded with running mean/var (inference mode).
    dcw = params["dconv_w"].reshape(C, C * N).astype(jnp.bfloat16)
    scale = params["bn_gamma"] / jnp.sqrt(params["bn_var"] + eps)
    shift = params["bn_beta"] - params["bn_mean"] * scale
    res = x.reshape(B, C, M)                                     # residual, no transpose
    z = pallas_dconv_bn_relu_res(x_off, dcw, scale, shift, res)  # (B, C, M) bf16
    z_nchw = z.reshape(B, C, H, W)

    # ---- dcn_conv2 : Conv2d(in_c -> out_c, kernel_size, stride, padding) ----
    a3, Ho2, Wo2 = _conv2_taps_lane_dense(z_nchw, kernel_size, kernel_size,
                                          stride, padding)       # (C*k*k, B*M2) bf16
    out_c = params["conv2_w"].shape[0]
    c2w = params["conv2_w"].reshape(out_c, C * kernel_size * kernel_size
                                    ).astype(jnp.bfloat16)
    out = pallas_matmul_bias(a3, c2w, params["conv2_b"])         # (out_c, B*M2) f32
    out = out.reshape(out_c, B, Ho2, Wo2).transpose(1, 0, 2, 3)  # (B, out_c, Ho, Wo)
    return out


if __name__ == "__main__":
    key = jax.random.PRNGKey(0)
    kx, kp = jax.random.split(key)

    in_channels, out_channels = 4, 8
    kernel_size, stride, padding = 3, 2, 1

    x = jax.random.normal(kx, (2, in_channels, 16, 16), jnp.float32)
    params = init_params(kp, in_channels, out_channels, kernel_size)

    fwd = jax.jit(functools.partial(basic_block_forward, kernel_size=kernel_size,
                                    stride=stride, padding=padding))
    out = jax.block_until_ready(fwd(x, params))
    assert out.shape == (2, out_channels, 8, 8), out.shape
    assert out.dtype == jnp.float32
    print("KERNEL_OK")
</pallas_src>

<mosaic_0001>
module attributes {stable_mosaic.version = 11 : i64} {
  func.func @_pconv3x3_kernel(%arg0: i32, %arg1: memref<1x4x290xf32, #tpu.memory_space<vmem>>, %arg2: memref<18x36xf32, #tpu.memory_space<vmem>>, %arg3: memref<18x1xf32, #tpu.memory_space<vmem>>, %arg4: memref<2x256xf32, #tpu.memory_space<vmem>>, %arg5: memref<1x18x256xf32, #tpu.memory_space<vmem>>) attributes {dimension_semantics = [#tpu.dimension_semantics<parallel>], iteration_bounds = array<i64: 2>, scalar_prefetch = 0 : i64, scratch_operands = 0 : i64, tpu.core_type = #tpu.core_type<tc>, window_params = [{transform_indices = @transform_0, window_bounds = array<i64: 1, 4, 290>}, {pipeline_mode = #tpu.pipeline_mode<synchronous>, transform_indices = @transform_1, window_bounds = array<i64: 18, 36>}, {pipeline_mode = #tpu.pipeline_mode<synchronous>, transform_indices = @transform_2, window_bounds = array<i64: 18, 1>}, {pipeline_mode = #tpu.pipeline_mode<synchronous>, transform_indices = @transform_3, window_bounds = array<i64: 2, 256>}, {transform_indices = @transform_4, window_bounds = array<i64: 1, 18, 256>}]} {
    %c0 = arith.constant 0 : index
    %c0_0 = arith.constant 0 : index
    %c0_1 = arith.constant 0 : index
    %0 = vector.load %arg1[%c0, %c0_0, %c0_1] : memref<1x4x290xf32, #tpu.memory_space<vmem>>, vector<1x4x290xf32>
    %1 = vector.shape_cast %0 : vector<1x4x290xf32> to vector<4x290xf32>
    %c0_2 = arith.constant 0 : index
    %c0_3 = arith.constant 0 : index
    %2 = vector.load %arg4[%c0_2, %c0_3] : memref<2x256xf32, #tpu.memory_space<vmem>>, vector<1x256xf32>
    %c1 = arith.constant 1 : index
    %c0_4 = arith.constant 0 : index
    %3 = vector.load %arg4[%c1, %c0_4] : memref<2x256xf32, #tpu.memory_space<vmem>>, vector<1x256xf32>
    %4 = vector.extract_strided_slice %1 {offsets = [0, 0], sizes = [4, 256], strides = [1, 1]} : vector<4x290xf32> to vector<4x256xf32>
    %5 = vector.broadcast %2 : vector<1x256xf32> to vector<4x256xf32>
    %6 = arith.mulf %4, %5 : vector<4x256xf32>
    %7 = vector.extract_strided_slice %1 {offsets = [0, 1], sizes = [4, 256], strides = [1, 1]} : vector<4x290xf32> to vector<4x256xf32>
    %8 = vector.extract_strided_slice %1 {offsets = [0, 2], sizes = [4, 256], strides = [1, 1]} : vector<4x290xf32> to vector<4x256xf32>
    %9 = vector.broadcast %3 : vector<1x256xf32> to vector<4x256xf32>
    %10 = arith.mulf %8, %9 : vector<4x256xf32>
    %11 = vector.extract_strided_slice %1 {offsets = [0, 16], sizes = [4, 256], strides = [1, 1]} : vector<4x290xf32> to vector<4x256xf32>
    %12 = vector.broadcast %2 : vector<1x256xf32> to vector<4x256xf32>
    %13 = arith.mulf %11, %12 : vector<4x256xf32>
    %14 = vector.extract_strided_slice %1 {offsets = [0, 17], sizes = [4, 256], strides = [1, 1]} : vector<4x290xf32> to vector<4x256xf32>
    %15 = vector.extract_strided_slice %1 {offsets = [0, 18], sizes = [4, 256], strides = [1, 1]} : vector<4x290xf32> to vector<4x256xf32>
    %16 = vector.broadcast %3 : vector<1x256xf32> to vector<4x256xf32>
    %17 = arith.mulf %15, %16 : vector<4x256xf32>
    %18 = vector.extract_strided_slice %1 {offsets = [0, 32], sizes = [4, 256], strides = [1, 1]} : vector<4x290xf32> to vector<4x256xf32>
    %19 = vector.broadcast %2 : vector<1x256xf32> to vector<4x256xf32>
    %20 = arith.mulf %18, %19 : vector<4x256xf32>
    %21 = vector.extract_strided_slice %1 {offsets = [0, 33], sizes = [4, 256], strides = [1, 1]} : vector<4x290xf32> to vector<4x256xf32>
    %22 = vector.extract_strided_slice %1 {offsets = [0, 34], sizes = [4, 256], strides = [1, 1]} : vector<4x290xf32> to vector<4x256xf32>
    %23 = vector.broadcast %3 : vector<1x256xf32> to vector<4x256xf32>
    %24 = arith.mulf %22, %23 : vector<4x256xf32>
    %25 = tpu.concatenate %6, %7, %10, %13, %14, %17, %20, %21, %24 in 0 : vector<4x256xf32>, vector<4x256xf32>, vector<4x256xf32>, vector<4x256xf32>, vector<4x256xf32>, vector<4x256xf32>, vector<4x256xf32>, vector<4x256xf32>, vector<4x256xf32> -> vector<36x256xf32>
    %c0_5 = arith.constant 0 : index
    %c0_6 = arith.constant 0 : index
    %26 = vector.load %arg2[%c0_5, %c0_6] : memref<18x36xf32, #tpu.memory_space<vmem>>, vector<18x36xf32>
    %cst = arith.constant dense<0.000000e+00> : vector<18x256xf32>
    %27 = tpu.matmul %26, %25, %cst {dimension_numbers = #tpu.dot_dimension_numbers<[1], [0], [0], [1], [0, 0, 1, 1], [], []>} : vector<18x36xf32>, vector<36x256xf32>, vector<18x256xf32> -> vector<18x256xf32>
    %c0_7 = arith.constant 0 : index
    %c0_8 = arith.constant 0 : index
    %28 = vector.load %arg3[%c0_7, %c0_8] : memref<18x1xf32, #tpu.memory_space<vmem>>, vector<18x1xf32>
    %29 = vector.broadcast %28 : vector<18x1xf32> to vector<18x256xf32>
    %30 = arith.addf %27, %29 : vector<18x256xf32>
    %c0_9 = arith.constant 0 : index
    %c0_10 = arith.constant 0 : index
    %c0_11 = arith.constant 0 : index
    %31 = vector.load %arg5[%c0_9, %c0_10, %c0_11] : memref<1x18x256xf32, #tpu.memory_space<vmem>>, vector<1x18x256xf32>
    %32 = vector.shape_cast %31 : vector<1x18x256xf32> to vector<18x256xf32>
    %33 = vector.shape_cast %30 : vector<18x256xf32> to vector<1x18x256xf32>
    tpu.vector_store %arg5[%c0_9, %c0_10, %c0_11], %33 {strides = array<i32>} : memref<1x18x256xf32, #tpu.memory_space<vmem>>, vector<1x18x256xf32>,
    return
  }
  func.func @transform_0(%arg0: i32) -> (i32, i32, i32) {
    %c0_i32 = arith.constant 0 : i32
    %c0_i32_0 = arith.constant 0 : i32
    %c0_i32_1 = arith.constant 0 : i32
    return %arg0, %c0_i32, %c0_i32_0 : i32, i32, i32
  }
  func.func @transform_1(%arg0: i32) -> (i32, i32) {
    %c0_i32 = arith.constant 0 : i32
    %c0_i32_0 = arith.constant 0 : i32
    %c0_i32_1 = arith.constant 0 : i32
    return %c0_i32, %c0_i32_0 : i32, i32
  }
  func.func @transform_2(%arg0: i32) -> (i32, i32) {
    %c0_i32 = arith.constant 0 : i32
    %c0_i32_0 = arith.constant 0 : i32
    %c0_i32_1 = arith.constant 0 : i32
    return %c0_i32, %c0_i32_0 : i32, i32
  }
  func.func @transform_3(%arg0: i32) -> (i32, i32) {
    %c0_i32 = arith.constant 0 : i32
    %c0_i32_0 = arith.constant 0 : i32
    %c0_i32_1 = arith.constant 0 : i32
    return %c0_i32, %c0_i32_0 : i32, i32
  }
  func.func @transform_4(%arg0: i32) -> (i32, i32, i32) {
    %c0_i32 = arith.constant 0 : i32
    %c0_i32_0 = arith.constant 0 : i32
    %c0_i32_1 = arith.constant 0 : i32
    return %arg0, %c0_i32, %c0_i32_0 : i32, i32, i32
  }
}

module attributes {stable_mosaic.version = 11 : i64} {
  func.func @_dcn_bn_relu_res_kernel(%arg0: i32, %arg1: i32, %arg2: memref<1x36x256xbf16, #tpu.memory_space<vmem>>, %arg3: memref<4x36xbf16, #tpu.memory_space<vmem>>, %arg4: memref<4x1xf32, #tpu.memory_space<vmem>>, %arg5: memref<4x1xf32, #tpu.memory_space<vmem>>, %arg6: memref<1x4x256xf32, #tpu.memory_space<vmem>>, %arg7: memref<1x4x256xbf16, #tpu.memory_space<vmem>>) attributes {dimension_semantics = [#tpu.dimension_semantics<parallel>, #tpu.dimension_semantics<parallel>], iteration_bounds = array<i64: 2, 1>, scalar_prefetch = 0 : i64, scratch_operands = 0 : i64, tpu.core_type = #tpu.core_type<tc>, window_params = [{transform_indices = @transform_0, window_bounds = array<i64: 1, 36, 256>}, {pipeline_mode = #tpu.pipeline_mode<synchronous>, transform_indices = @transform_1, window_bounds = array<i64: 4, 36>}, {pipeline_mode = #tpu.pipeline_mode<synchronous>, transform_indices = @transform_2, window_bounds = array<i64: 4, 1>}, {pipeline_mode = #tpu.pipeline_mode<synchronous>, transform_indices = @transform_3, window_bounds = array<i64: 4, 1>}, {transform_indices = @transform_4, window_bounds = array<i64: 1, 4, 256>}, {transform_indices = @transform_5, window_bounds = array<i64: 1, 4, 256>}]} {
    %c0 = arith.constant 0 : index
    %c0_0 = arith.constant 0 : index
    %0 = vector.load %arg3[%c0, %c0_0] : memref<4x36xbf16, #tpu.memory_space<vmem>>, vector<4x36xbf16>
    %c0_1 = arith.constant 0 : index
    %c0_2 = arith.constant 0 : index
    %c0_3 = arith.constant 0 : index
    %1 = vector.load %arg2[%c0_1, %c0_2, %c0_3] : memref<1x36x256xbf16, #tpu.memory_space<vmem>>, vector<1x36x256xbf16>
    %2 = vector.shape_cast %1 : vector<1x36x256xbf16> to vector<36x256xbf16>
    %cst = arith.constant dense<0.000000e+00> : vector<4x256xf32>
    %3 = tpu.matmul %0, %2, %cst {dimension_numbers = #tpu.dot_dimension_numbers<[1], [0], [0], [1], [0, 0, 1, 1], [], []>} : vector<4x36xbf16>, vector<36x256xbf16>, vector<4x256xf32> -> vector<4x256xf32>
    %c0_4 = arith.constant 0 : index
    %c0_5 = arith.constant 0 : index
    %4 = vector.load %arg4[%c0_4, %c0_5] : memref<4x1xf32, #tpu.memory_space<vmem>>, vector<4x1xf32>
    %5 = vector.broadcast %4 : vector<4x1xf32> to vector<4x256xf32>
    %6 = arith.mulf %3, %5 : vector<4x256xf32>
    %c0_6 = arith.constant 0 : index
    %c0_7 = arith.constant 0 : index
    %7 = vector.load %arg5[%c0_6, %c0_7] : memref<4x1xf32, #tpu.memory_space<vmem>>, vector<4x1xf32>
    %8 = vector.broadcast %7 : vector<4x1xf32> to vector<4x256xf32>
    %9 = arith.addf %6, %8 : vector<4x256xf32>
    %cst_8 = arith.constant 0.000000e+00 : f32
    %10 = vector.broadcast %cst_8 : f32 to vector<4x256xf32>
    %11 = arith.maximumf %9, %10 : vector<4x256xf32>
    %c0_9 = arith.constant 0 : index
    %c0_10 = arith.constant 0 : index
    %c0_11 = arith.constant 0 : index
    %12 = vector.load %arg6[%c0_9, %c0_10, %c0_11] : memref<1x4x256xf32, #tpu.memory_space<vmem>>, vector<1x4x256xf32>
    %13 = vector.shape_cast %12 : vector<1x4x256xf32> to vector<4x256xf32>
    %14 = arith.addf %11, %13 : vector<4x256xf32>
    %15 = arith.truncf %14 : vector<4x256xf32> to vector<4x256xbf16>
    %c0_12 = arith.constant 0 : index
    %c0_13 = arith.constant 0 : index
    %c0_14 = arith.constant 0 : index
    %16 = vector.load %arg7[%c0_12, %c0_13, %c0_14] : memref<1x4x256xbf16, #tpu.memory_space<vmem>>, vector<1x4x256xbf16>
    %17 = vector.shape_cast %16 : vector<1x4x256xbf16> to vector<4x256xbf16>
    %18 = vector.shape_cast %15 : vector<4x256xbf16> to vector<1x4x256xbf16>
    tpu.vector_store %arg7[%c0_12, %c0_13, %c0_14], %18 {strides = array<i32>} : memref<1x4x256xbf16, #tpu.memory_space<vmem>>, vector<1x4x256xbf16>,
    return
  }
  func.func @transform_0(%arg0: i32, %arg1: i32) -> (i32, i32, i32) {
    %c0_i32 = arith.constant 0 : i32
    %c0_i32_0 = arith.constant 0 : i32
    return %arg0, %c0_i32, %arg1 : i32, i32, i32
  }
  func.func @transform_1(%arg0: i32, %arg1: i32) -> (i32, i32) {
    %c0_i32 = arith.constant 0 : i32
    %c0_i32_0 = arith.constant 0 : i32
    %c0_i32_1 = arith.constant 0 : i32
    return %c0_i32, %c0_i32_0 : i32, i32
  }
  func.func @transform_2(%arg0: i32, %arg1: i32) -> (i32, i32) {
    %c0_i32 = arith.constant 0 : i32
    %c0_i32_0 = arith.constant 0 : i32
    %c0_i32_1 = arith.constant 0 : i32
    return %c0_i32, %c0_i32_0 : i32, i32
  }
  func.func @transform_3(%arg0: i32, %arg1: i32) -> (i32, i32) {
    %c0_i32 = arith.constant 0 : i32
    %c0_i32_0 = arith.constant 0 : i32
    %c0_i32_1 = arith.constant 0 : i32
    return %c0_i32, %c0_i32_0 : i32, i32
  }
  func.func @transform_4(%arg0: i32, %arg1: i32) -> (i32, i32, i32) {
    %c0_i32 = arith.constant 0 : i32
    %c0_i32_0 = arith.constant 0 : i32
    return %arg0, %c0_i32, %arg1 : i32, i32, i32
  }
  func.func @transform_5(%arg0: i32, %arg1: i32) -> (i32, i32, i32) {
    %c0_i32 = arith.constant 0 : i32
    %c0_i32_0 = arith.constant 0 : i32
    return %arg0, %c0_i32, %arg1 : i32, i32, i32
  }
}

module attributes {stable_mosaic.version = 11 : i64} {
  func.func @_matmul_bias_kernel(%arg0: i32, %arg1: memref<36x128xbf16, #tpu.memory_space<vmem>>, %arg2: memref<8x36xbf16, #tpu.memory_space<vmem>>, %arg3: memref<8x1xf32, #tpu.memory_space<vmem>>, %arg4: memref<8x128xf32, #tpu.memory_space<vmem>>) attributes {dimension_semantics = [#tpu.dimension_semantics<parallel>], iteration_bounds = array<i64: 1>, scalar_prefetch = 0 : i64, scratch_operands = 0 : i64, tpu.core_type = #tpu.core_type<tc>, window_params = [{transform_indices = @transform_0, window_bounds = array<i64: 36, 128>}, {pipeline_mode = #tpu.pipeline_mode<synchronous>, transform_indices = @transform_1, window_bounds = array<i64: 8, 36>}, {pipeline_mode = #tpu.pipeline_mode<synchronous>, transform_indices = @transform_2, window_bounds = array<i64: 8, 1>}, {transform_indices = @transform_3, window_bounds = array<i64: 8, 128>}]} {
    %c0 = arith.constant 0 : index
    %c0_0 = arith.constant 0 : index
    %0 = vector.load %arg2[%c0, %c0_0] : memref<8x36xbf16, #tpu.memory_space<vmem>>, vector<8x36xbf16>
    %c0_1 = arith.constant 0 : index
    %c0_2 = arith.constant 0 : index
    %1 = vector.load %arg1[%c0_1, %c0_2] : memref<36x128xbf16, #tpu.memory_space<vmem>>, vector<36x128xbf16>
    %cst = arith.constant dense<0.000000e+00> : vector<8x128xf32>
    %2 = tpu.matmul %0, %1, %cst {dimension_numbers = #tpu.dot_dimension_numbers<[1], [0], [0], [1], [0, 0, 1, 1], [], []>} : vector<8x36xbf16>, vector<36x128xbf16>, vector<8x128xf32> -> vector<8x128xf32>
    %c0_3 = arith.constant 0 : index
    %c0_4 = arith.constant 0 : index
    %3 = vector.load %arg3[%c0_3, %c0_4] : memref<8x1xf32, #tpu.memory_space<vmem>>, vector<8x1xf32>
    %4 = vector.broadcast %3 : vector<8x1xf32> to vector<8x128xf32>
    %5 = arith.addf %2, %4 : vector<8x128xf32>
    %c0_5 = arith.constant 0 : index
    %c0_6 = arith.constant 0 : index
    %6 = vector.load %arg4[%c0_5, %c0_6] : memref<8x128xf32, #tpu.memory_space<vmem>>, vector<8x128xf32>
    tpu.vector_store %arg4[%c0_5, %c0_6], %5 {strides = array<i32>} : memref<8x128xf32, #tpu.memory_space<vmem>>, vector<8x128xf32>,
    return
  }
  func.func @transform_0(%arg0: i32) -> (i32, i32) {
    %c0_i32 = arith.constant 0 : i32
    %c0_i32_0 = arith.constant 0 : i32
    return %c0_i32, %arg0 : i32, i32
  }
  func.func @transform_1(%arg0: i32) -> (i32, i32) {
    %c0_i32 = arith.constant 0 : i32
    %c0_i32_0 = arith.constant 0 : i32
    %c0_i32_1 = arith.constant 0 : i32
    return %c0_i32, %c0_i32_0 : i32, i32
  }
  func.func @transform_2(%arg0: i32) -> (i32, i32) {
    %c0_i32 = arith.constant 0 : i32
    %c0_i32_0 = arith.constant 0 : i32
    %c0_i32_1 = arith.constant 0 : i32
    return %c0_i32, %c0_i32_0 : i32, i32
  }
  func.func @transform_3(%arg0: i32) -> (i32, i32) {
    %c0_i32 = arith.constant 0 : i32
    %c0_i32_0 = arith.constant 0 : i32
    return %c0_i32, %arg0 : i32, i32
  }
}

</mosaic_0001>

<llo_original>
// kernel: mul.31
$region0: #{mul.31}
  %s0 = inlined_call_operand.vmem [shape: f32[2,9,16,16], index: 0, kind: input, shape index: {}]
  %s1 = inlined_call_operand.vmem [shape: f32[2,9,256], index: 1, kind: output, shape index: {}]
  $region1: #{mul.31} parent=0
    #allocation0 [shape = 'u8[73728]{0}', space=vmem, size = 0x12000, scoped, tag = 'scoped mem for output reshape']
    %v2 = vld [vmem:[%s0] ss:$8 sm:$0xf]
    %v3 = vld [vmem:[%s0] ss:$8 sm:$0xf0]
    %vm4 = vcmask 1047556
    %v5 = vsel %vm4, %v3, %v2
    %vm6 = vcmask 130048
    %7 = vst.msk [vmem:[#allocation0] ss:$8 sm:$0x3] %vm6, %v5
    %s8 = scalar_lea.vmem [#allocation0], 4294967281
    %9 = vst.msk [vmem:[%s8] ss:$8 sm:$0xc] %vm6, %v5
    %s10 = scalar_lea.vmem [#allocation0], 4294967280
    %11 = vst.msk [vmem:[%s10] ss:$8 sm:$0x30] %vm6, %v5
    %s12 = scalar_lea.vmem [#allocation0], 4294967265
    %13 = vst.msk [vmem:[%s12] ss:$8 sm:$0xc0] %vm6, %v5
    %s14 = scalar_lea.vmem %s0, 64
    %v15 = vld [vmem:[%s14] ss:$8 sm:$0xf]
    %s16 = scalar_lea.vmem %s0, 64
    %v17 = vld [vmem:[%s16] ss:$8 sm:$0xf0]
    %vm18 = vcmask 1047556
    %v19 = vsel %vm18, %v17, %v15
    %vm20 = vcmask 130048
    %s21 = scalar_lea.vmem [#allocation0], 32
    %22 = vst.msk [vmem:[%s21] ss:$8 sm:$0x3] %vm20, %v19
    %s23 = scalar_lea.vmem [#allocation0], 17
    %24 = vst.msk [vmem:[%s23] ss:$8 sm:$0xc] %vm20, %v19
    %s25 = scalar_lea.vmem [#allocation0], 16
    %26 = vst.msk [vmem:[%s25] ss:$8 sm:$0x30] %vm20, %v19
    %s27 = scalar_lea.vmem [#allocation0], 1
    %28 = vst.msk [vmem:[%s27] ss:$8 sm:$0xc0] %vm20, %v19
    %s29 = scalar_lea.vmem %s0, 128
    %v30 = vld [vmem:[%s29] ss:$8 sm:$0xf]
    %s31 = scalar_lea.vmem %s0, 128
    %v32 = vld [vmem:[%s31] ss:$8 sm:$0xf0]
    %vm33 = vcmask 1047556
    %v34 = vsel %vm33, %v32, %v30
    %vm35 = vcmask 130048
    %s36 = scalar_lea.vmem [#allocation0], 64
    %37 = vst.msk [vmem:[%s36] ss:$8 sm:$0x3] %vm35, %v34
    %s38 = scalar_lea.vmem [#allocation0], 49
    %39 = vst.msk [vmem:[%s38] ss:$8 sm:$0xc] %vm35, %v34
    %s40 = scalar_lea.vmem [#allocation0], 48
    %41 = vst.msk [vmem:[%s40] ss:$8 sm:$0x30] %vm35, %v34
    %s42 = scalar_lea.vmem [#allocation0], 33
    %43 = vst.msk [vmem:[%s42] ss:$8 sm:$0xc0] %vm35, %v34
    %s44 = scalar_lea.vmem %s0, 192
    %v45 = vld [vmem:[%s44] ss:$8 sm:$0xf]
    %s46 = scalar_lea.vmem %s0, 192
    %v47 = vld [vmem:[%s46] ss:$8 sm:$0xf0]
    %vm48 = vcmask 1047556
    %v49 = vsel %vm48, %v47, %v45
    %vm50 = vcmask 130048
    %s51 = scalar_lea.vmem [#allocation0], 96
    %52 = vst.msk [vmem:[%s51] ss:$8 sm:$0x3] %vm50, %v49
    %s53 = scalar_lea.vmem [#allocation0], 81
    %54 = vst.msk [vmem:[%s53] ss:$8 sm:$0xc] %vm50, %v49
    %s55 = scalar_lea.vmem [#allocation0], 80
    %56 = vst.msk [vmem:[%s55] ss:$8 sm:$0x30] %vm50, %v49
    %s57 = scalar_lea.vmem [#allocation0], 65
    %58 = vst.msk [vmem:[%s57] ss:$8 sm:$0xc0] %vm50, %v49
    %s59 = scalar_lea.vmem %s0, 256
    %v60 = vld [vmem:[%s59] ss:$8 sm:$0xf]
    %vm61 = vcmask 130048
    %s62 = scalar_lea.vmem [#allocation0], 128
    %63 = vst.msk [vmem:[%s62] ss:$8 sm:$0x3] %vm61, %v60
    %s64 = scalar_lea.vmem [#allocation0], 113
    %65 = vst.msk [vmem:[%s64] ss:$8 sm:$0xc] %vm61, %v60
    %s66 = scalar_lea.vmem %s0, 7
    %s67 = smov 3
    %v68 = vld [vmem:[%s66] ss:$16 sm:%s67]
    %s69 = scalar_lea.vmem %s0, 4294967279
    %s70 = smov 12
    %v71 = vld [vmem:[%s69] ss:$16 sm:%s70]
    %vm72 = vcmask 1043458
    %v73 = vsel %vm72, %v71, %v68
    %s74 = scalar_lea.vmem %s0, 4294967271
    %s75 = smov 48
    %v76 = vld [vmem:[%s74] ss:$16 sm:%s75]
    %vm77 = vcmask 1045508
    %v78 = vsel %vm77, %v76, %v73
    %s79 = scalar_lea.vmem %s0, 4294967247
    %s80 = smov 192
    %v81 = vld [vmem:[%s79] ss:$16 sm:%s80]
    %vm82 = vcmask 1047558
    %v83 = vsel %vm82, %v81, %v78
    %84 = vrot.lane.b32.xlu0 %v83, 112
    %v85 = vpop.permute.xlu0 %84
    %vm86 = vcmask 1048448
    %87 = vst.msk [vmem:[#allocation0] sm:$0x3] %vm86, %v85
    %s88 = scalar_lea.vmem [#allocation0], 6
    %89 = vst.msk [vmem:[%s88] sm:$0xc] %vm86, %v85
    %s90 = scalar_lea.vmem [#allocation0], 12
    %91 = vst.msk [vmem:[%s90] sm:$0x30] %vm86, %v85
    %s92 = scalar_lea.vmem [#allocation0], 18
    %93 = vst.msk [vmem:[%s92] sm:$0xc0] %vm86, %v85
    %s94 = scalar_lea.vmem %s0, 71
    %s95 = smov 3
    %v96 = vld [vmem:[%s94] ss:$16 sm:%s95]
    %s97 = scalar_lea.vmem %s0, 47
    %s98 = smov 12
    %v99 = vld [vmem:[%s97] ss:$16 sm:%s98]
    %vm100 = vcmask 1043458
    %v101 = vsel %vm100, %v99, %v96
    %s102 = scalar_lea.vmem %s0, 39
    %s103 = smov 48
    %v104 = vld [vmem:[%s102] ss:$16 sm:%s103]
    %vm105 = vcmask 1045508
    %v106 = vsel %vm105, %v104, %v101
    %s107 = scalar_lea.vmem %s0, 15
    %s108 = smov 192
    %v109 = vld [vmem:[%s107] ss:$16 sm:%s108]
    %vm110 = vcmask 1047558
    %v111 = vsel %vm110, %v109, %v106
    %112 = vrot.lane.b32.xlu0 %v111, 112
    %v113 = vpop.permute.xlu0 %112
    %vm114 = vcmask 1048448
    %s115 = scalar_lea.vmem [#allocation0], 32
    %116 = vst.msk [vmem:[%s115] sm:$0x3] %vm114, %v113
    %s117 = scalar_lea.vmem [#allocation0], 38
    %118 = vst.msk [vmem:[%s117] sm:$0xc] %vm114, %v113
    %s119 = scalar_lea.vmem [#allocation0], 44
    %120 = vst.msk [vmem:[%s119] sm:$0x30] %vm114, %v113
    %s121 = scalar_lea.vmem [#allocation0], 50
    %122 = vst.msk [vmem:[%s121] sm:$0xc0] %vm114, %v113
    %s123 = scalar_lea.vmem %s0, 135
    %s124 = smov 3
    %v125 = vld [vmem:[%s123] ss:$16 sm:%s124]
    %s126 = scalar_lea.vmem %s0, 111
    %s127 = smov 12
    %v128 = vld [vmem:[%s126] ss:$16 sm:%s127]
    %vm129 = vcmask 1043458
    %v130 = vsel %vm129, %v128, %v125
    %s131 = scalar_lea.vmem %s0, 103
    %s132 = smov 48
    %v133 = vld [vmem:[%s131] ss:$16 sm:%s132]
    %vm134 = vcmask 1045508
    %v135 = vsel %vm134, %v133, %v130
    %s136 = scalar_lea.vmem %s0, 79
    %s137 = smov 192
    %v138 = vld [vmem:[%s136] ss:$16 sm:%s137]
    %vm139 = vcmask 1047558
    %v140 = vsel %vm139, %v138, %v135
    %141 = vrot.lane.b32.xlu0 %v140, 112
    %v142 = vpop.permute.xlu0 %141
    %vm143 = vcmask 1048448
    %s144 = scalar_lea.vmem [#allocation0], 64
    %145 = vst.msk [vmem:[%s144] sm:$0x3] %vm143, %v142
    %s146 = scalar_lea.vmem [#allocation0], 70
    %147 = vst.msk [vmem:[%s146] sm:$0xc] %vm143, %v142
    %s148 = scalar_lea.vmem [#allocation0], 76
    %149 = vst.msk [vmem:[%s148] sm:$0x30] %vm143, %v142
    %s150 = scalar_lea.vmem [#allocation0], 82
    %151 = vst.msk [vmem:[%s150] sm:$0xc0] %vm143, %v142
    %s152 = scalar_lea.vmem %s0, 199
    %s153 = smov 3
    %v154 = vld [vmem:[%s152] ss:$16 sm:%s153]
    %s155 = scalar_lea.vmem %s0, 175
    %s156 = smov 12
    %v157 = vld [vmem:[%s155] ss:$16 sm:%s156]
    %vm158 = vcmask 1043458
    %v159 = vsel %vm158, %v157, %v154
    %s160 = scalar_lea.vmem %s0, 167
    %s161 = smov 48
    %v162 = vld [vmem:[%s160] ss:$16 sm:%s161]
    %vm163 = vcmask 1045508
    %v164 = vsel %vm163, %v162, %v159
    %s165 = scalar_lea.vmem %s0, 143
    %s166 = smov 192
    %v167 = vld [vmem:[%s165] ss:$16 sm:%s166]
    %vm168 = vcmask 1047558
    %v169 = vsel %vm168, %v167, %v164
    %170 = vrot.lane.b32.xlu0 %v169, 112
    %v171 = vpop.permute.xlu0 %170
    %vm172 = vcmask 1048448
    %s173 = scalar_lea.vmem [#allocation0], 96
    %174 = vst.msk [vmem:[%s173] sm:$0x3] %vm172, %v171
    %s175 = scalar_lea.vmem [#allocation0], 102
    %176 = vst.msk [vmem:[%s175] sm:$0xc] %vm172, %v171
    %s177 = scalar_lea.vmem [#allocation0], 108
    %178 = vst.msk [vmem:[%s177] sm:$0x30] %vm172, %v171
    %s179 = scalar_lea.vmem [#allocation0], 114
    %180 = vst.msk [vmem:[%s179] sm:$0xc0] %vm172, %v171
    %s181 = scalar_lea.vmem %s0, 263
    %s182 = smov 3
    %v183 = vld [vmem:[%s181] ss:$16 sm:%s182]
    %s184 = scalar_lea.vmem %s0, 239
    %s185 = smov 12
    %v186 = vld [vmem:[%s184] ss:$16 sm:%s185]
    %vm187 = vcmask 1043458
    %v188 = vsel %vm187, %v186, %v183
    %189 = vrot.lane.b32.xlu0 %v188, 112
    %v190 = vpop.permute.xlu0 %189
    %vm191 = vcmask 1048448
    %s192 = scalar_lea.vmem [#allocation0], 128
    %193 = vst.msk [vmem:[%s192] sm:$0x3] %vm191, %v190
    %s194 = scalar_lea.vmem [#allocation0], 134
    %195 = vst.msk [vmem:[%s194] sm:$0xc] %vm191, %v190
    %s196 = scalar_lea.vmem %s0, 6
    %s197 = smov 3
    %v198 = vld [vmem:[%s196] ss:$16 sm:%s197]
    %s199 = scalar_lea.vmem %s0, 4294967278
    %s200 = smov 12
    %v201 = vld [vmem:[%s199] ss:$16 sm:%s200]
    %vm202 = vcmask 1043458
    %v203 = vsel %vm202, %v201, %v198
    %s204 = scalar_lea.vmem %s0, 4294967270
    %s205 = smov 48
    %v206 = vld [vmem:[%s204] ss:$16 sm:%s205]
    %vm207 = vcmask 1045508
    %v208 = vsel %vm207, %v206, %v203
    %s209 = scalar_lea.vmem %s0, 4294967246
    %s210 = smov 192
    %v211 = vld [vmem:[%s209] ss:$16 sm:%s210]
    %vm212 = vcmask 1047558
    %v213 = vsel %vm212, %v211, %v208
    %214 = vrot.lane.b32.xlu0 %v213, 96
    %v215 = vpop.permute.xlu0 %214
    %vm216 = vcmask 917248
    %217 = vst.msk [vmem:[#allocation0] sm:$0x3] %vm216, %v215
    %s218 = scalar_lea.vmem [#allocation0], 6
    %219 = vst.msk [vmem:[%s218] sm:$0xc] %vm216, %v215
    %s220 = scalar_lea.vmem [#allocation0], 12
    %221 = vst.msk [vmem:[%s220] sm:$0x30] %vm216, %v215
    %s222 = scalar_lea.vmem [#allocation0], 18
    %223 = vst.msk [vmem:[%s222] sm:$0xc0] %vm216, %v215
    %s224 = scalar_lea.vmem %s0, 70
    %s225 = smov 3
    %v226 = vld [vmem:[%s224] ss:$16 sm:%s225]
    %s227 = scalar_lea.vmem %s0, 46
    %s228 = smov 12
    %v229 = vld [vmem:[%s227] ss:$16 sm:%s228]
    %vm230 = vcmask 1043458
    %v231 = vsel %vm230, %v229, %v226
    %s232 = scalar_lea.vmem %s0, 38
    %s233 = smov 48
    %v234 = vld [vmem:[%s232] ss:$16 sm:%s233]
    %vm235 = vcmask 1045508
    %v236 = vsel %vm235, %v234, %v231
    %s237 = scalar_lea.vmem %s0, 14
    %s238 = smov 192
    %v239 = vld [vmem:[%s237] ss:$16 sm:%s238]
    %vm240 = vcmask 1047558
    %v241 = vsel %vm240, %v239, %v236
    %242 = vrot.lane.b32.xlu0 %v241, 96
    %v243 = vpop.permute.xlu0 %242
    %vm244 = vcmask 917248
    %s245 = scalar_lea.vmem [#allocation0], 32
    %246 = vst.msk [vmem:[%s245] sm:$0x3] %vm244, %v243
    %s247 = scalar_lea.vmem [#allocation0], 38
    %248 = vst.msk [vmem:[%s247] sm:$0xc] %vm244, %v243
    %s249 = scalar_lea.vmem [#allocation0], 44
    %250 = vst.msk [vmem:[%s249] sm:$0x30] %vm244, %v243
    %s251 = scalar_lea.vmem [#allocation0], 50
    %252 = vst.msk [vmem:[%s251] sm:$0xc0] %vm244, %v243
    %s253 = scalar_lea.vmem %s0, 134
    %s254 = smov 3
    %v255 = vld [vmem:[%s253] ss:$16 sm:%s254]
    %s256 = scalar_lea.vmem %s0, 110
    %s257 = smov 12
    %v258 = vld [vmem:[%s256] ss:$16 sm:%s257]
    %vm259 = vcmask 1043458
    %v260 = vsel %vm259, %v258, %v255
    %s261 = scalar_lea.vmem %s0, 102
    %s262 = smov 48
    %v263 = vld [vmem:[%s261] ss:$16 sm:%s262]
    %vm264 = vcmask 1045508
    %v265 = vsel %vm264, %v263, %v260
    %s266 = scalar_lea.vmem %s0, 78
    %s267 = smov 192
    %v268 = vld [vmem:[%s266] ss:$16 sm:%s267]
    %vm269 = vcmask 1047558
    %v270 = vsel %vm269, %v268, %v265
    %271 = vrot.lane.b32.xlu0 %v270, 96
    %v272 = vpop.permute.xlu0 %271
    %vm273 = vcmask 917248
    %s274 = scalar_lea.vmem [#allocation0], 64
    %275 = vst.msk [vmem:[%s274] sm:$0x3] %vm273, %v272
    %s276 = scalar_lea.vmem [#allocation0], 70
    %277 = vst.msk [vmem:[%s276] sm:$0xc] %vm273, %v272
    %s278 = scalar_lea.vmem [#allocation0], 76
    %279 = vst.msk [vmem:[%s278] sm:$0x30] %vm273, %v272
    %s280 = scalar_lea.vmem [#allocation0], 82
    %281 = vst.msk [vmem:[%s280] sm:$0xc0] %vm273, %v272
    %s282 = scalar_lea.vmem %s0, 198
    %s283 = smov 3
    %v284 = vld [vmem:[%s282] ss:$16 sm:%s283]
    %s285 = scalar_lea.vmem %s0, 174
    %s286 = smov 12
    %v287 = vld [vmem:[%s285] ss:$16 sm:%s286]
    %vm288 = vcmask 1043458
    %v289 = vsel %vm288, %v287, %v284
    %s290 = scalar_lea.vmem %s0, 166
    %s291 = smov 48
    %v292 = vld [vmem:[%s290] ss:$16 sm:%s291]
    %vm293 = vcmask 1045508
    %v294 = vsel %vm293, %v292, %v289
    %s295 = scalar_lea.vmem %s0, 142
    %s296 = smov 192
    %v297 = vld [vmem:[%s295] ss:$16 sm:%s296]
    %vm298 = vcmask 1047558
    %v299 = vsel %vm298, %v297, %v294
    %300 = vrot.lane.b32.xlu0 %v299, 96
    %v301 = vpop.permute.xlu0 %300
    %vm302 = vcmask 917248
    %s303 = scalar_lea.vmem [#allocation0], 96
    %304 = vst.msk [vmem:[%s303] sm:$0x3] %vm302, %v301
    %s305 = scalar_lea.vmem [#allocation0], 102
    %306 = vst.msk [vmem:[%s305] sm:$0xc] %vm302, %v301
    %s307 = scalar_lea.vmem [#allocation0], 108
    %308 = vst.msk [vmem:[%s307] sm:$0x30] %vm302, %v301
    %s309 = scalar_lea.vmem [#allocation0], 114
    %310 = vst.msk [vmem:[%s309] sm:$0xc0] %vm302, %v301
    %s311 = scalar_lea.vmem %s0, 262
    %s312 = smov 3
    %v313 = vld [vmem:[%s311] ss:$16 sm:%s312]
    %s314 = scalar_lea.vmem %s0, 238
    %s315 = smov 12
    %v316 = vld [vmem:[%s314] ss:$16 sm:%s315]
    %vm317 = vcmask 1043458
    %v318 = vsel %vm317, %v316, %v313
    %319 = vrot.lane.b32.xlu0 %v318, 96
    %v320 = vpop.permute.xlu0 %319
    %vm321 = vcmask 917248
    %s322 = scalar_lea.vmem [#allocation0], 128
    %323 = vst.msk [vmem:[%s322] sm:$0x3] %vm321, %v320
    %s324 = scalar_lea.vmem [#allocation0], 134
    %325 = vst.msk [vmem:[%s324] sm:$0xc] %vm321, %v320
    %s326 = scalar_lea.vmem %s0, 5
    %s327 = smov 3
    %v328 = vld [vmem:[%s326] ss:$16 sm:%s327]
    %s329 = scalar_lea.vmem %s0, 4294967277
    %s330 = smov 12
    %v331 = vld [vmem:[%s329] ss:$16 sm:%s330]
    %vm332 = vcmask 1043458
    %v333 = vsel %vm332, %v331, %v328
    %s334 = scalar_lea.vmem %s0, 4294967269
    %s335 = smov 48
    %v336 = vld [vmem:[%s334] ss:$16 sm:%s335]
    %vm337 = vcmask 1045508
    %v338 = vsel %vm337, %v336, %v333
    %s339 = scalar_lea.vmem %s0, 4294967245
    %s340 = smov 192
    %v341 = vld [vmem:[%s339] ss:$16 sm:%s340]
    %vm342 = vcmask 1047558
    %v343 = vsel %vm342, %v341, %v338
    %344 = vrot.lane.b32.xlu0 %v343, 80
    %v345 = vpop.permute.xlu0 %344
    %vm346 = vcmask 786048
    %347 = vst.msk [vmem:[#allocation0] sm:$0x3] %vm346, %v345
    %s348 = scalar_lea.vmem [#allocation0], 6
    %349 = vst.msk [vmem:[%s348] sm:$0xc] %vm346, %v345
    %s350 = scalar_lea.vmem [#allocation0], 12
    %351 = vst.msk [vmem:[%s350] sm:$0x30] %vm346, %v345
    %s352 = scalar_lea.vmem [#allocation0], 18
    %353 = vst.msk [vmem:[%s352] sm:$0xc0] %vm346, %v345
    %s354 = scalar_lea.vmem %s0, 69
    %s355 = smov 3
    %v356 = vld [vmem:[%s354] ss:$16 sm:%s355]
    %s357 = scalar_lea.vmem %s0, 45
    %s358 = smov 12
    %v359 = vld [vmem:[%s357] ss:$16 sm:%s358]
    %vm360 = vcmask 1043458
    %v361 = vsel %vm360, %v359, %v356
    %s362 = scalar_lea.vmem %s0, 37
    %s363 = smov 48
    %v364 = vld [vmem:[%s362] ss:$16 sm:%s363]
    %vm365 = vcmask 1045508
    %v366 = vsel %vm365, %v364, %v361
    %s367 = scalar_lea.vmem %s0, 13
    %s368 = smov 192
    %v369 = vld [vmem:[%s367] ss:$16 sm:%s368]
    %vm370 = vcmask 1047558
    %v371 = vsel %vm370, %v369, %v366
    %372 = vrot.lane.b32.xlu0 %v371, 80
    %v373 = vpop.permute.xlu0 %372
    %vm374 = vcmask 786048
    %s375 = scalar_lea.vmem [#allocation0], 32
    %376 = vst.msk [vmem:[%s375] sm:$0x3] %vm374, %v373
    %s377 = scalar_lea.vmem [#allocation0], 38
    %378 = vst.msk [vmem:[%s377] sm:$0xc] %vm374, %v373
    %s379 = scalar_lea.vmem [#allocation0], 44
    %380 = vst.msk [vmem:[%s379] sm:$0x30] %vm374, %v373
    %s381 = scalar_lea.vmem [#allocation0], 50
    %382 = vst.msk [vmem:[%s381] sm:$0xc0] %vm374, %v373
    %s383 = scalar_lea.vmem %s0, 133
    %s384 = smov 3
    %v385 = vld [vmem:[%s383] ss:$16 sm:%s384]
    %s386 = scalar_lea.vmem %s0, 109
    %s387 = smov 12
    %v388 = vld [vmem:[%s386] ss:$16 sm:%s387]
    %vm389 = vcmask 1043458
    %v390 = vsel %vm389, %v388, %v385
    %s391 = scalar_lea.vmem %s0, 101
    %s392 = smov 48
    %v393 = vld [vmem:[%s391] ss:$16 sm:%s392]
    %vm394 = vcmask 1045508
    %v395 = vsel %vm394, %v393, %v390
    %s396 = scalar_lea.vmem %s0, 77
    %s397 = smov 192
    %v398 = vld [vmem:[%s396] ss:$16 sm:%s397]
    %vm399 = vcmask 1047558
    %v400 = vsel %vm399, %v398, %v395
    %401 = vrot.lane.b32.xlu0 %v400, 80
    %v402 = vpop.permute.xlu0 %401
    %vm403 = vcmask 786048
    %s404 = scalar_lea.vmem [#allocation0], 64
    %405 = vst.msk [vmem:[%s404] sm:$0x3] %vm403, %v402
    %s406 = scalar_lea.vmem [#allocation0], 70
    %407 = vst.msk [vmem:[%s406] sm:$0xc] %vm403, %v402
    %s408 = scalar_lea.vmem [#allocation0], 76
    %409 = vst.msk [vmem:[%s408] sm:$0x30] %vm403, %v402
    %s410 = scalar_lea.vmem [#allocation0], 82
    %411 = vst.msk [vmem:[%s410] sm:$0xc0] %vm403, %v402
    %s412 = scalar_lea.vmem %s0, 197
    %s413 = smov 3
    %v414 = vld [vmem:[%s412] ss:$16 sm:%s413]
    %s415 = scalar_lea.vmem %s0, 173
    %s416 = smov 12
    %v417 = vld [vmem:[%s415] ss:$16 sm:%s416]
    %vm418 = vcmask 1043458
    %v419 = vsel %vm418, %v417, %v414
    %s420 = scalar_lea.vmem %s0, 165
    %s421 = smov 48
    %v422 = vld [vmem:[%s420] ss:$16 sm:%s421]
    %vm423 = vcmask 1045508
    %v424 = vsel %vm423, %v422, %v419
    %s425 = scalar_lea.vmem %s0, 141
    %s426 = smov 192
    %v427 = vld [vmem:[%s425] ss:$16 sm:%s426]
    %vm428 = vcmask 1047558
    %v429 = vsel %vm428, %v427, %v424
    %430 = vrot.lane.b32.xlu0 %v429, 80
    %v431 = vpop.permute.xlu0 %430
    %vm432 = vcmask 786048
    %s433 = scalar_lea.vmem [#allocation0], 96
    %434 = vst.msk [vmem:[%s433] sm:$0x3] %vm432, %v431
    %s435 = scalar_lea.vmem [#allocation0], 102
    %436 = vst.msk [vmem:[%s435] sm:$0xc] %vm432, %v431
    %s437 = scalar_lea.vmem [#allocation0], 108
    %438 = vst.msk [vmem:[%s437] sm:$0x30] %vm432, %v431
    %s439 = scalar_lea.vmem [#allocation0], 114
    %440 = vst.msk [vmem:[%s439] sm:$0xc0] %vm432, %v431
    %s441 = scalar_lea.vmem %s0, 261
    %s442 = smov 3
    %v443 = vld [vmem:[%s441] ss:$16 sm:%s442]
    %s444 = scalar_lea.vmem %s0, 237
    %s445 = smov 12
    %v446 = vld [vmem:[%s444] ss:$16 sm:%s445]
    %vm447 = vcmask 1043458
    %v448 = vsel %vm447, %v446, %v443
    %449 = vrot.lane.b32.xlu0 %v448, 80
    %v450 = vpop.permute.xlu0 %449
    %vm451 = vcmask 786048
    %s452 = scalar_lea.vmem [#allocation0], 128
    %453 = vst.msk [vmem:[%s452] sm:$0x3] %vm451, %v450
    %s454 = scalar_lea.vmem [#allocation0], 134
    %455 = vst.msk [vmem:[%s454] sm:$0xc] %vm451, %v450
    %s456 = scalar_lea.vmem %s0, 4
    %s457 = smov 3
    %v458 = vld [vmem:[%s456] ss:$16 sm:%s457]
    %s459 = scalar_lea.vmem %s0, 4294967276
    %s460 = smov 12
    %v461 = vld [vmem:[%s459] ss:$16 sm:%s460]
    %vm462 = vcmask 1043458
    %v463 = vsel %vm462, %v461, %v458
    %s464 = scalar_lea.vmem %s0, 4294967268
    %s465 = smov 48
    %v466 = vld [vmem:[%s464] ss:$16 sm:%s465]
    %vm467 = vcmask 1045508
    %v468 = vsel %vm467, %v466, %v463
    %s469 = scalar_lea.vmem %s0, 4294967244
    %s470 = smov 192
    %v471 = vld [vmem:[%s469] ss:$16 sm:%s470]
    %vm472 = vcmask 1047558
    %v473 = vsel %vm472, %v471, %v468
    %474 = vrot.lane.b32.xlu0 %v473, 64
    %v475 = vpop.permute.xlu0 %474
    %vm476 = vcmask 654848
    %477 = vst.msk [vmem:[#allocation0] sm:$0x3] %vm476, %v475
    %s478 = scalar_lea.vmem [#allocation0], 6
    %479 = vst.msk [vmem:[%s478] sm:$0xc] %vm476, %v475
    %s480 = scalar_lea.vmem [#allocation0], 12
    %481 = vst.msk [vmem:[%s480] sm:$0x30] %vm476, %v475
    %s482 = scalar_lea.vmem [#allocation0], 18
    %483 = vst.msk [vmem:[%s482] sm:$0xc0] %vm476, %v475
    %s484 = scalar_lea.vmem %s0, 68
    %s485 = smov 3
    %v486 = vld [vmem:[%s484] ss:$16 sm:%s485]
    %s487 = scalar_lea.vmem %s0, 44
    %s488 = smov 12
    %v489 = vld [vmem:[%s487] ss:$16 sm:%s488]
    %vm490 = vcmask 1043458
    %v491 = vsel %vm490, %v489, %v486
    %s492 = scalar_lea.vmem %s0, 36
    %s493 = smov 48
    %v494 = vld [vmem:[%s492] ss:$16 sm:%s493]
    %vm495 = vcmask 1045508
    %v496 = vsel %vm495, %v494, %v491
    %s497 = scalar_lea.vmem %s0, 12
    %s498 = smov 192
    %v499 = vld [vmem:[%s497] ss:$16 sm:%s498]
    %vm500 = vcmask 1047558
    %v501 = vsel %vm500, %v499, %v496
    %502 = vrot.lane.b32.xlu0 %v501, 64
    %v503 = vpop.permute.xlu0 %502
    %vm504 = vcmask 654848
    %s505 = scalar_lea.vmem [#allocation0], 32
    %506 = vst.msk [vmem:[%s505] sm:$0x3] %vm504, %v503
    %s507 = scalar_lea.vmem [#allocation0], 38
    %508 = vst.msk [vmem:[%s507] sm:$0xc] %vm504, %v503
    %s509 = scalar_lea.vmem [#allocation0], 44
    %510 = vst.msk [vmem:[%s509] sm:$0x30] %vm504, %v503
    %s511 = scalar_lea.vmem [#allocation0], 50
    %512 = vst.msk [vmem:[%s511] sm:$0xc0] %vm504, %v503
    %s513 = scalar_lea.vmem %s0, 132
    %s514 = smov 3
    %v515 = vld [vmem:[%s513] ss:$16 sm:%s514]
    %s516 = scalar_lea.vmem %s0, 108
    %s517 = smov 12
    %v518 = vld [vmem:[%s516] ss:$16 sm:%s517]
    %vm519 = vcmask 1043458
    %v520 = vsel %vm519, %v518, %v515
    %s521 = scalar_lea.vmem %s0, 100
    %s522 = smov 48
    %v523 = vld [vmem:[%s521] ss:$16 sm:%s522]
    %vm524 = vcmask 1045508
    %v525 = vsel %vm524, %v523, %v520
    %s526 = scalar_lea.vmem %s0, 76
    %s527 = smov 192
    %v528 = vld [vmem:[%s526] ss:$16 sm:%s527]
    %vm529 = vcmask 1047558
    %v530 = vsel %vm529, %v528, %v525
    %531 = vrot.lane.b32.xlu0 %v530, 64
    %v532 = vpop.permute.xlu0 %531
    %vm533 = vcmask 654848
    %s534 = scalar_lea.vmem [#allocation0], 64
    %535 = vst.msk [vmem:[%s534] sm:$0x3] %vm533, %v532
    %s536 = scalar_lea.vmem [#allocation0], 70
    %537 = vst.msk [vmem:[%s536] sm:$0xc] %vm533, %v532
    %s538 = scalar_lea.vmem [#allocation0], 76
    %539 = vst.msk [vmem:[%s538] sm:$0x30] %vm533, %v532
    %s540 = scalar_lea.vmem [#allocation0], 82
    %541 = vst.msk [vmem:[%s540] sm:$0xc0] %vm533, %v532
    %s542 = scalar_lea.vmem %s0, 196
    %s543 = smov 3
    %v544 = vld [vmem:[%s542] ss:$16 sm:%s543]
    %s545 = scalar_lea.vmem %s0, 172
    %s546 = smov 12
    %v547 = vld [vmem:[%s545] ss:$16 sm:%s546]
    %vm548 = vcmask 1043458
    %v549 = vsel %vm548, %v547, %v544
    %s550 = scalar_lea.vmem %s0, 164
    %s551 = smov 48
    %v552 = vld [vmem:[%s550] ss:$16 sm:%s551]
    %vm553 = vcmask 1045508
    %v554 = vsel %vm553, %v552, %v549
    %s555 = scalar_lea.vmem %s0, 140
    %s556 = smov 192
    %v557 = vld [vmem:[%s555] ss:$16 sm:%s556]
    %vm558 = vcmask 1047558
    %v559 = vsel %vm558, %v557, %v554
    %560 = vrot.lane.b32.xlu0 %v559, 64
    %v561 = vpop.permute.xlu0 %560
    %vm562 = vcmask 654848
    %s563 = scalar_lea.vmem [#allocation0], 96
    %564 = vst.msk [vmem:[%s563] sm:$0x3] %vm562, %v561
    %s565 = scalar_lea.vmem [#allocation0], 102
    %566 = vst.msk [vmem:[%s565] sm:$0xc] %vm562, %v561
    %s567 = scalar_lea.vmem [#allocation0], 108
    %568 = vst.msk [vmem:[%s567] sm:$0x30] %vm562, %v561
    %s569 = scalar_lea.vmem [#allocation0], 114
    %570 = vst.msk [vmem:[%s569] sm:$0xc0] %vm562, %v561
    %s571 = scalar_lea.vmem %s0, 260
    %s572 = smov 3
    %v573 = vld [vmem:[%s571] ss:$16 sm:%s572]
    %s574 = scalar_lea.vmem %s0, 236
    %s575 = smov 12
    %v576 = vld [vmem:[%s574] ss:$16 sm:%s575]
    %vm577 = vcmask 1043458
    %v578 = vsel %vm577, %v576, %v573
    %579 = vrot.lane.b32.xlu0 %v578, 64
    %v580 = vpop.permute.xlu0 %579
    %vm581 = vcmask 654848
    %s582 = scalar_lea.vmem [#allocation0], 128
    %583 = vst.msk [vmem:[%s582] sm:$0x3] %vm581, %v580
    %s584 = scalar_lea.vmem [#allocation0], 134
    %585 = vst.msk [vmem:[%s584] sm:$0xc] %vm581, %v580
    %s586 = scalar_lea.vmem %s0, 3
    %s587 = smov 3
    %v588 = vld [vmem:[%s586] ss:$16 sm:%s587]
    %s589 = scalar_lea.vmem %s0, 4294967275
    %s590 = smov 12
    %v591 = vld [vmem:[%s589] ss:$16 sm:%s590]
    %vm592 = vcmask 1043458
    %v593 = vsel %vm592, %v591, %v588
    %s594 = scalar_lea.vmem %s0, 4294967267
    %s595 = smov 48
    %v596 = vld [vmem:[%s594] ss:$16 sm:%s595]
    %vm597 = vcmask 1045508
    %v598 = vsel %vm597, %v596, %v593
    %s599 = scalar_lea.vmem %s0, 4294967243
    %s600 = smov 192
    %v601 = vld [vmem:[%s599] ss:$16 sm:%s600]
    %vm602 = vcmask 1047558
    %v603 = vsel %vm602, %v601, %v598
    %604 = vrot.lane.b32.xlu0 %v603, 48
    %v605 = vpop.permute.xlu0 %604
    %vm606 = vcmask 523648
    %607 = vst.msk [vmem:[#allocation0] sm:$0x3] %vm606, %v605
    %s608 = scalar_lea.vmem [#allocation0], 6
    %609 = vst.msk [vmem:[%s608] sm:$0xc] %vm606, %v605
    %s610 = scalar_lea.vmem [#allocation0], 12
    %611 = vst.msk [vmem:[%s610] sm:$0x30] %vm606, %v605
    %s612 = scalar_lea.vmem [#allocation0], 18
    %613 = vst.msk [vmem:[%s612] sm:$0xc0] %vm606, %v605
    %s614 = scalar_lea.vmem %s0, 67
    %s615 = smov 3
    %v616 = vld [vmem:[%s614] ss:$16 sm:%s615]
    %s617 = scalar_lea.vmem %s0, 43
    %s618 = smov 12
    %v619 = vld [vmem:[%s617] ss:$16 sm:%s618]
    %vm620 = vcmask 1043458
    %v621 = vsel %vm620, %v619, %v616
    %s622 = scalar_lea.vmem %s0, 35
    %s623 = smov 48
    %v624 = vld [vmem:[%s622] ss:$16 sm:%s623]
    %vm625 = vcmask 1045508
    %v626 = vsel %vm625, %v624, %v621
    %s627 = scalar_lea.vmem %s0, 11
    %s628 = smov 192
    %v629 = vld [vmem:[%s627] ss:$16 sm:%s628]
    %vm630 = vcmask 1047558
    %v631 = vsel %vm630, %v629, %v626
    %632 = vrot.lane.b32.xlu0 %v631, 48
    %v633 = vpop.permute.xlu0 %632
    %vm634 = vcmask 523648
    %s635 = scalar_lea.vmem [#allocation0], 32
    %636 = vst.msk [vmem:[%s635] sm:$0x3] %vm634, %v633
    %s637 = scalar_lea.vmem [#allocation0], 38
    %638 = vst.msk [vmem:[%s637] sm:$0xc] %vm634, %v633
    %s639 = scalar_lea.vmem [#allocation0], 44
    %640 = vst.msk [vmem:[%s639] sm:$0x30] %vm634, %v633
    %s641 = scalar_lea.vmem [#allocation0], 50
    %642 = vst.msk [vmem:[%s641] sm:$0xc0] %vm634, %v633
    %s643 = scalar_lea.vmem %s0, 131
    %s644 = smov 3
    %v645 = vld [vmem:[%s643] ss:$16 sm:%s644]
    %s646 = scalar_lea.vmem %s0, 107
    %s647 = smov 12
    %v648 = vld [vmem:[%s646] ss:$16 sm:%s647]
    %vm649 = vcmask 1043458
    %v650 = vsel %vm649, %v648, %v645
    %s651 = scalar_lea.vmem %s0, 99
    %s652 = smov 48
    %v653 = vld [vmem:[%s651] ss:$16 sm:%s652]
    %vm654 = vcmask 1045508
    %v655 = vsel %vm654, %v653, %v650
    %s656 = scalar_lea.vmem %s0, 75
    %s657 = smov 192
    %v658 = vld [vmem:[%s656] ss:$16 sm:%s657]
    %vm659 = vcmask 1047558
    %v660 = vsel %vm659, %v658, %v655
    %661 = vrot.lane.b32.xlu0 %v660, 48
    %v662 = vpop.permute.xlu0 %661
    %vm663 = vcmask 523648
    %s664 = scalar_lea.vmem [#allocation0], 64
    %665 = vst.msk [vmem:[%s664] sm:$0x3] %vm663, %v662
    %s666 = scalar_lea.vmem [#allocation0], 70
    %667 = vst.msk [vmem:[%s666] sm:$0xc] %vm663, %v662
    %s668 = scalar_lea.vmem [#allocation0], 76
    %669 = vst.msk [vmem:[%s668] sm:$0x30] %vm663, %v662
    %s670 = scalar_lea.vmem [#allocation0], 82
    %671 = vst.msk [vmem:[%s670] sm:$0xc0] %vm663, %v662
    %s672 = scalar_lea.vmem %s0, 195
    %s673 = smov 3
    %v674 = vld [vmem:[%s672] ss:$16 sm:%s673]
    %s675 = scalar_lea.vmem %s0, 171
    %s676 = smov 12
    %v677 = vld [vmem:[%s675] ss:$16 sm:%s676]
    %vm678 = vcmask 1043458
    %v679 = vsel %vm678, %v677, %v674
    %s680 = scalar_lea.vmem %s0, 163
    %s681 = smov 48
    %v682 = vld [vmem:[%s680] ss:$16 sm:%s681]
    %vm683 = vcmask 1045508
    %v684 = vsel %vm683, %v682, %v679
    %s685 = scalar_lea.vmem %s0, 139
    %s686 = smov 192
    %v687 = vld [vmem:[%s685] ss:$16 sm:%s686]
    %vm688 = vcmask 1047558
    %v689 = vsel %vm688, %v687, %v684
    %690 = vrot.lane.b32.xlu0 %v689, 48
    %v691 = vpop.permute.xlu0 %690
    %vm692 = vcmask 523648
    %s693 = scalar_lea.vmem [#allocation0], 96
    %694 = vst.msk [vmem:[%s693] sm:$0x3] %vm692, %v691
    %s695 = scalar_lea.vmem [#allocation0], 102
    %696 = vst.msk [vmem:[%s695] sm:$0xc] %vm692, %v691
    %s697 = scalar_lea.vmem [#allocation0], 108
    %698 = vst.msk [vmem:[%s697] sm:$0x30] %vm692, %v691
    %s699 = scalar_lea.vmem [#allocation0], 114
    %700 = vst.msk [vmem:[%s699] sm:$0xc0] %vm692, %v691
    %s701 = scalar_lea.vmem %s0, 259
    %s702 = smov 3
    %v703 = vld [vmem:[%s701] ss:$16 sm:%s702]
    %s704 = scalar_lea.vmem %s0, 235
    %s705 = smov 12
    %v706 = vld [vmem:[%s704] ss:$16 sm:%s705]
    %vm707 = vcmask 1043458
    %v708 = vsel %vm707, %v706, %v703
    %709 = vrot.lane.b32.xlu0 %v708, 48
    %v710 = vpop.permute.xlu0 %709
    %vm711 = vcmask 523648
    %s712 = scalar_lea.vmem [#allocation0], 128
    %713 = vst.msk [vmem:[%s712] sm:$0x3] %vm711, %v710
    %s714 = scalar_lea.vmem [#allocation0], 134
    %715 = vst.msk [vmem:[%s714] sm:$0xc] %vm711, %v710
    %s716 = scalar_lea.vmem %s0, 2
    %s717 = smov 3
    %v718 = vld [vmem:[%s716] ss:$16 sm:%s717]
    %s719 = scalar_lea.vmem %s0, 4294967274
    %s720 = smov 12
    %v721 = vld [vmem:[%s719] ss:$16 sm:%s720]
    %vm722 = vcmask 1043458
    %v723 = vsel %vm722, %v721, %v718
    %s724 = scalar_lea.vmem %s0, 4294967266
    %s725 = smov 48
    %v726 = vld [vmem:[%s724] ss:$16 sm:%s725]
    %vm727 = vcmask 1045508
    %v728 = vsel %vm727, %v726, %v723
    %s729 = scalar_lea.vmem %s0, 4294967242
    %s730 = smov 192
    %v731 = vld [vmem:[%s729] ss:$16 sm:%s730]
    %vm732 = vcmask 1047558
    %v733 = vsel %vm732, %v731, %v728
    %734 = vrot.lane.b32.xlu0 %v733, 32
    %v735 = vpop.permute.xlu0 %734
    %vm736 = vcmask 392448
    %737 = vst.msk [vmem:[#allocation0] sm:$0x3] %vm736, %v735
    %s738 = scalar_lea.vmem [#allocation0], 6
    %739 = vst.msk [vmem:[%s738] sm:$0xc] %vm736, %v735
    %s740 = scalar_lea.vmem [#allocation0], 12
    %741 = vst.msk [vmem:[%s740] sm:$0x30] %vm736, %v735
    %s742 = scalar_lea.vmem [#allocation0], 18
    %743 = vst.msk [vmem:[%s742] sm:$0xc0] %vm736, %v735
    %s744 = scalar_lea.vmem %s0, 66
    %s745 = smov 3
    %v746 = vld [vmem:[%s744] ss:$16 sm:%s745]
    %s747 = scalar_lea.vmem %s0, 42
    %s748 = smov 12
    %v749 = vld [vmem:[%s747] ss:$16 sm:%s748]
    %vm750 = vcmask 1043458
    %v751 = vsel %vm750, %v749, %v746
    %s752 = scalar_lea.vmem %s0, 34
    %s753 = smov 48
    %v754 = vld [vmem:[%s752] ss:$16 sm:%s753]
    %vm755 = vcmask 1045508
    %v756 = vsel %vm755, %v754, %v751
    %s757 = scalar_lea.vmem %s0, 10
    %s758 = smov 192
    %v759 = vld [vmem:[%s757] ss:$16 sm:%s758]
    %vm760 = vcmask 1047558
    %v761 = vsel %vm760, %v759, %v756
    %762 = vrot.lane.b32.xlu0 %v761, 32
    %v763 = vpop.permute.xlu0 %762
    %vm764 = vcmask 392448
    %s765 = scalar_lea.vmem [#allocation0], 32
    %766 = vst.msk [vmem:[%s765] sm:$0x3] %vm764, %v763
    %s767 = scalar_lea.vmem [#allocation0], 38
    %768 = vst.msk [vmem:[%s767] sm:$0xc] %vm764, %v763
    %s769 = scalar_lea.vmem [#allocation0], 44
    %770 = vst.msk [vmem:[%s769] sm:$0x30] %vm764, %v763
    %s771 = scalar_lea.vmem [#allocation0], 50
    %772 = vst.msk [vmem:[%s771] sm:$0xc0] %vm764, %v763
    %s773 = scalar_lea.vmem %s0, 130
    %s774 = smov 3
    %v775 = vld [vmem:[%s773] ss:$16 sm:%s774]
    %s776 = scalar_lea.vmem %s0, 106
    %s777 = smov 12
    %v778 = vld [vmem:[%s776] ss:$16 sm:%s777]
    %vm779 = vcmask 1043458
    %v780 = vsel %vm779, %v778, %v775
    %s781 = scalar_lea.vmem %s0, 98
    %s782 = smov 48
    %v783 = vld [vmem:[%s781] ss:$16 sm:%s782]
    %vm784 = vcmask 1045508
    %v785 = vsel %vm784, %v783, %v780
    %s786 = scalar_lea.vmem %s0, 74
    %s787 = smov 192
    %v788 = vld [vmem:[%s786] ss:$16 sm:%s787]
    %vm789 = vcmask 1047558
    %v790 = vsel %vm789, %v788, %v785
    %791 = vrot.lane.b32.xlu0 %v790, 32
    %v792 = vpop.permute.xlu0 %791
    %vm793 = vcmask 392448
    %s794 = scalar_lea.vmem [#allocation0], 64
    %795 = vst.msk [vmem:[%s794] sm:$0x3] %vm793, %v792
    %s796 = scalar_lea.vmem [#allocation0], 70
    %797 = vst.msk [vmem:[%s796] sm:$0xc] %vm793, %v792
    %s798 = scalar_lea.vmem [#allocation0], 76
    %799 = vst.msk [vmem:[%s798] sm:$0x30] %vm793, %v792
    %s800 = scalar_lea.vmem [#allocation0], 82
    %801 = vst.msk [vmem:[%s800] sm:$0xc0] %vm793, %v792
    %s802 = scalar_lea.vmem %s0, 194
    %s803 = smov 3
    %v804 = vld [vmem:[%s802] ss:$16 sm:%s803]
    %s805 = scalar_lea.vmem %s0, 170
    %s806 = smov 12
    %v807 = vld [vmem:[%s805] ss:$16 sm:%s806]
    %vm808 = vcmask 1043458
    %v809 = vsel %vm808, %v807, %v804
    %s810 = scalar_lea.vmem %s0, 162
    %s811 = smov 48
    %v812 = vld [vmem:[%s810] ss:$16 sm:%s811]
    %vm813 = vcmask 1045508
    %v814 = vsel %vm813, %v812, %v809
    %s815 = scalar_lea.vmem %s0, 138
    %s816 = smov 192
    %v817 = vld [vmem:[%s815] ss:$16 sm:%s816]
    %vm818 = vcmask 1047558
    %v819 = vsel %vm818, %v817, %v814
    %820 = vrot.lane.b32.xlu0 %v819, 32
    %v821 = vpop.permute.xlu0 %820
    %vm822 = vcmask 392448
    %s823 = scalar_lea.vmem [#allocation0], 96
    %824 = vst.msk [vmem:[%s823] sm:$0x3] %vm822, %v821
    %s825 = scalar_lea.vmem [#allocation0], 102
    %826 = vst.msk [vmem:[%s825] sm:$0xc] %vm822, %v821
    %s827 = scalar_lea.vmem [#allocation0], 108
    %828 = vst.msk [vmem:[%s827] sm:$0x30] %vm822, %v821
    %s829 = scalar_lea.vmem [#allocation0], 114
    %830 = vst.msk [vmem:[%s829] sm:$0xc0] %vm822, %v821
    %s831 = scalar_lea.vmem %s0, 258
    %s832 = smov 3
    %v833 = vld [vmem:[%s831] ss:$16 sm:%s832]
    %s834 = scalar_lea.vmem %s0, 234
    %s835 = smov 12
    %v836 = vld [vmem:[%s834] ss:$16 sm:%s835]
    %vm837 = vcmask 1043458
    %v838 = vsel %vm837, %v836, %v833
    %839 = vrot.lane.b32.xlu0 %v838, 32
    %v840 = vpop.permute.xlu0 %839
    %vm841 = vcmask 392448
    %s842 = scalar_lea.vmem [#allocation0], 128
    %843 = vst.msk [vmem:[%s842] sm:$0x3] %vm841, %v840
    %s844 = scalar_lea.vmem [#allocation0], 134
    %845 = vst.msk [vmem:[%s844] sm:$0xc] %vm841, %v840
    %s846 = scalar_lea.vmem %s0, 1
    %s847 = smov 3
    %v848 = vld [vmem:[%s846] ss:$16 sm:%s847]
    %s849 = scalar_lea.vmem %s0, 4294967273
    %s850 = smov 12
    %v851 = vld [vmem:[%s849] ss:$16 sm:%s850]
    %vm852 = vcmask 1043458
    %v853 = vsel %vm852, %v851, %v848
    %s854 = scalar_lea.vmem %s0, 4294967265
    %s855 = smov 48
    %v856 = vld [vmem:[%s854] ss:$16 sm:%s855]
    %vm857 = vcmask 1045508
    %v858 = vsel %vm857, %v856, %v853
    %s859 = scalar_lea.vmem %s0, 4294967241
    %s860 = smov 192
    %v861 = vld [vmem:[%s859] ss:$16 sm:%s860]
    %vm862 = vcmask 1047558
    %v863 = vsel %vm862, %v861, %v858
    %864 = vrot.lane.b32.xlu0 %v863, 16
    %v865 = vpop.permute.xlu0 %864
    %vm866 = vcmask 261248
    %867 = vst.msk [vmem:[#allocation0] sm:$0x3] %vm866, %v865
    %s868 = scalar_lea.vmem [#allocation0], 6
    %869 = vst.msk [vmem:[%s868] sm:$0xc] %vm866, %v865
    %s870 = scalar_lea.vmem [#allocation0], 12
    %871 = vst.msk [vmem:[%s870] sm:$0x30] %vm866, %v865
    %s872 = scalar_lea.vmem [#allocation0], 18
    %873 = vst.msk [vmem:[%s872] sm:$0xc0] %vm866, %v865
    %s874 = scalar_lea.vmem %s0, 65
    %s875 = smov 3
    %v876 = vld [vmem:[%s874] ss:$16 sm:%s875]
    %s877 = scalar_lea.vmem %s0, 41
    %s878 = smov 12
    %v879 = vld [vmem:[%s877] ss:$16 sm:%s878]
    %vm880 = vcmask 1043458
    %v881 = vsel %vm880, %v879, %v876
    %s882 = scalar_lea.vmem %s0, 33
    %s883 = smov 48
    %v884 = vld [vmem:[%s882] ss:$16 sm:%s883]
    %vm885 = vcmask 1045508
    %v886 = vsel %vm885, %v884, %v881
    %s887 = scalar_lea.vmem %s0, 9
    %s888 = smov 192
    %v889 = vld [vmem:[%s887] ss:$16 sm:%s888]
    %vm890 = vcmask 1047558
    %v891 = vsel %vm890, %v889, %v886
    %892 = vrot.lane.b32.xlu0 %v891, 16
    %v893 = vpop.permute.xlu0 %892
    %vm894 = vcmask 261248
    %s895 = scalar_lea.vmem [#allocation0], 32
    %896 = vst.msk [vmem:[%s895] sm:$0x3] %vm894, %v893
    %s897 = scalar_lea.vmem [#allocation0], 38
    %898 = vst.msk [vmem:[%s897] sm:$0xc] %vm894, %v893
    %s899 = scalar_lea.vmem [#allocation0], 44
    %900 = vst.msk [vmem:[%s899] sm:$0x30] %vm894, %v893
    %s901 = scalar_lea.vmem [#allocation0], 50
    %902 = vst.msk [vmem:[%s901] sm:$0xc0] %vm894, %v893
    %s903 = scalar_lea.vmem %s0, 129
    %s904 = smov 3
    %v905 = vld [vmem:[%s903] ss:$16 sm:%s904]
    %s906 = scalar_lea.vmem %s0, 105
    %s907 = smov 12
    %v908 = vld [vmem:[%s906] ss:$16 sm:%s907]
    %vm909 = vcmask 1043458
    %v910 = vsel %vm909, %v908, %v905
    %s911 = scalar_lea.vmem %s0, 97
    %s912 = smov 48
    %v913 = vld [vmem:[%s911] ss:$16 sm:%s912]
    %vm914 = vcmask 1045508
    %v915 = vsel %vm914, %v913, %v910
    %s916 = scalar_lea.vmem %s0, 73
    %s917 = smov 192
    %v918 = vld [vmem:[%s916] ss:$16 sm:%s917]
    %vm919 = vcmask 1047558
    %v920 = vsel %vm919, %v918, %v915
    %921 = vrot.lane.b32.xlu0 %v920, 16
    %v922 = vpop.permute.xlu0 %921
    %vm923 = vcmask 261248
    %s924 = scalar_lea.vmem [#allocation0], 64
    %925 = vst.msk [vmem:[%s924] sm:$0x3] %vm923, %v922
    %s926 = scalar_lea.vmem [#allocation0], 70
    %927 = vst.msk [vmem:[%s926] sm:$0xc] %vm923, %v922
    %s928 = scalar_lea.vmem [#allocation0], 76
    %929 = vst.msk [vmem:[%s928] sm:$0x30] %vm923, %v922
    %s930 = scalar_lea.vmem [#allocation0], 82
    %931 = vst.msk [vmem:[%s930] sm:$0xc0] %vm923, %v922
    %s932 = scalar_lea.vmem %s0, 193
    %s933 = smov 3
    %v934 = vld [vmem:[%s932] ss:$16 sm:%s933]
    %s935 = scalar_lea.vmem %s0, 169
    %s936 = smov 12
    %v937 = vld [vmem:[%s935] ss:$16 sm:%s936]
    %vm938 = vcmask 1043458
    %v939 = vsel %vm938, %v937, %v934
    %s940 = scalar_lea.vmem %s0, 161
    %s941 = smov 48
    %v942 = vld [vmem:[%s940] ss:$16 sm:%s941]
    %vm943 = vcmask 1045508
    %v944 = vsel %vm943, %v942, %v939
    %s945 = scalar_lea.vmem %s0, 137
    %s946 = smov 192
    %v947 = vld [vmem:[%s945] ss:$16 sm:%s946]
    %vm948 = vcmask 1047558
    %v949 = vsel %vm948, %v947, %v944
    %950 = vrot.lane.b32.xlu0 %v949, 16
    %v951 = vpop.permute.xlu0 %950
    %vm952 = vcmask 261248
    %s953 = scalar_lea.vmem [#allocation0], 96
    %954 = vst.msk [vmem:[%s953] sm:$0x3] %vm952, %v951
    %s955 = scalar_lea.vmem [#allocation0], 102
    %956 = vst.msk [vmem:[%s955] sm:$0xc] %vm952, %v951
    %s957 = scalar_lea.vmem [#allocation0], 108
    %958 = vst.msk [vmem:[%s957] sm:$0x30] %vm952, %v951
    %s959 = scalar_lea.vmem [#allocation0], 114
    %960 = vst.msk [vmem:[%s959] sm:$0xc0] %vm952, %v951
    %s961 = scalar_lea.vmem %s0, 257
    %s962 = smov 3
    %v963 = vld [vmem:[%s961] ss:$16 sm:%s962]
    %s964 = scalar_lea.vmem %s0, 233
    %s965 = smov 12
    %v966 = vld [vmem:[%s964] ss:$16 sm:%s965]
    %vm967 = vcmask 1043458
    %v968 = vsel %vm967, %v966, %v963
    %969 = vrot.lane.b32.xlu0 %v968, 16
    %v970 = vpop.permute.xlu0 %969
    %vm971 = vcmask 261248
    %s972 = scalar_lea.vmem [#allocation0], 128
    %973 = vst.msk [vmem:[%s972] sm:$0x3] %vm971, %v970
    %s974 = scalar_lea.vmem [#allocation0], 134
    %975 = vst.msk [vmem:[%s974] sm:$0xc] %vm971, %v970
    %s977 = sshllo.u32 0, 2
    %v979 = vld [vmem:[#allocation0] sm:%s977]
    %s980 = sshllo.u32 0, 2
    %981 = vst [vmem:[%s1] sm:%s980] %v979
    %s982 = scalar_lea.vmem [#allocation0], 8
    %v983 = vld [vmem:[%s982] sm:%s977]
    %s984 = sshllo.u32 0, 2
    %s985 = scalar_lea.vmem %s1, 2
    %986 = vst [vmem:[%s985] sm:%s984] %v983
    %s987 = scalar_lea.vmem [#allocation0], 16
    %v988 = vld [vmem:[%s987] sm:%s977]
    %s989 = sshllo.u32 0, 2
    %s990 = smul.addr 2, 2
    %s991 = scalar_lea.vmem %s1, %s990
    %992 = vst [vmem:[%s991] sm:%s989] %v988
    %s993 = scalar_lea.vmem [#allocation0], 24
    %v994 = vld [vmem:[%s993] sm:%s977]
    %s995 = sshllo.u32 0, 2
    %s996 = smul.addr 2, 3
    %s997 = scalar_lea.vmem %s1, %s996
    %998 = vst [vmem:[%s997] sm:%s995] %v994
    %s999 = scalar_lea.vmem [#allocation0], 32
    %v1000 = vld [vmem:[%s999] sm:%s977]
    %s1001 = sshllo.u32 0, 2
    %s1002 = smul.addr 2, 4
    %s1003 = scalar_lea.vmem %s1, %s1002
    %1004 = vst [vmem:[%s1003] sm:%s1001] %v1000
    %s1005 = scalar_lea.vmem [#allocation0], 40
    %v1006 = vld [vmem:[%s1005] sm:%s977]
    %s1007 = sshllo.u32 0, 2
    %s1008 = smul.addr 2, 5
    %s1009 = scalar_lea.vmem %s1, %s1008
    %1010 = vst [vmem:[%s1009] sm:%s1007] %v1006
    %s1011 = scalar_lea.vmem [#allocation0], 48
    %v1012 = vld [vmem:[%s1011] sm:%s977]
    %s1013 = sshllo.u32 0, 2
    %s1014 = smul.addr 2, 6
    %s1015 = scalar_lea.vmem %s1, %s1014
    %1016 = vst [vmem:[%s1015] sm:%s1013] %v1012
    %s1017 = scalar_lea.vmem [#allocation0], 56
    %v1018 = vld [vmem:[%s1017] sm:%s977]
    %s1019 = sshllo.u32 0, 2
    %s1020 = smul.addr 2, 7
    %s1021 = scalar_lea.vmem %s1, %s1020
    %1022 = vst [vmem:[%s1021] sm:%s1019] %v1018
    %s1023 = scalar_lea.vmem [#allocation0], 64
    %v1024 = vld [vmem:[%s1023] sm:%s977]
    %s1025 = sshllo.u32 0, 2
    %s1026 = smul.addr 2, 8
    %s1027 = scalar_lea.vmem %s1, %s1026
    %1028 = vst [vmem:[%s1027] sm:%s1025] %v1024
    %s1029 = scalar_lea.vmem [#allocation0], 72
    %v1030 = vld [vmem:[%s1029] sm:%s977]
    %s1031 = sshllo.u32 0, 2
    %s1032 = smul.addr 2, 9
    %s1033 = scalar_lea.vmem %s1, %s1032
    %1034 = vst [vmem:[%s1033] sm:%s1031] %v1030
    %s1035 = scalar_lea.vmem [#allocation0], 80
    %v1036 = vld [vmem:[%s1035] sm:%s977]
    %s1037 = sshllo.u32 0, 2
    %s1038 = smul.addr 2, 10
    %s1039 = scalar_lea.vmem %s1, %s1038
    %1040 = vst [vmem:[%s1039] sm:%s1037] %v1036
    %s1041 = scalar_lea.vmem [#allocation0], 88
    %v1042 = vld [vmem:[%s1041] sm:%s977]
    %s1043 = sshllo.u32 0, 2
    %s1044 = smul.addr 2, 11
    %s1045 = scalar_lea.vmem %s1, %s1044
    %1046 = vst [vmem:[%s1045] sm:%s1043] %v1042
    %s1047 = scalar_lea.vmem [#allocation0], 96
    %v1048 = vld [vmem:[%s1047] sm:%s977]
    %s1049 = sshllo.u32 0, 2
    %s1050 = smul.addr 2, 12
    %s1051 = scalar_lea.vmem %s1, %s1050
    %1052 = vst [vmem:[%s1051] sm:%s1049] %v1048
    %s1053 = scalar_lea.vmem [#allocation0], 104
    %v1054 = vld [vmem:[%s1053] sm:%s977]
    %s1055 = sshllo.u32 0, 2
    %s1056 = smul.addr 2, 13
    %s1057 = scalar_lea.vmem %s1, %s1056
    %1058 = vst [vmem:[%s1057] sm:%s1055] %v1054
    %s1059 = scalar_lea.vmem [#allocation0], 112
    %v1060 = vld [vmem:[%s1059] sm:%s977]
    %s1061 = sshllo.u32 0, 2
    %s1062 = smul.addr 2, 14
    %s1063 = scalar_lea.vmem %s1, %s1062
    %1064 = vst [vmem:[%s1063] sm:%s1061] %v1060
    %s1065 = scalar_lea.vmem [#allocation0], 120
    %v1066 = vld [vmem:[%s1065] sm:%s977]
    %s1067 = sshllo.u32 0, 2
    %s1068 = smul.addr 2, 15
    %s1069 = scalar_lea.vmem %s1, %s1068
    %1070 = vst [vmem:[%s1069] sm:%s1067] %v1066
    %s1071 = scalar_lea.vmem [#allocation0], 128
    %v1072 = vld [vmem:[%s1071] sm:%s977]
    %s1073 = sshllo.u32 0, 2
    %s1074 = smul.addr 2, 16
    %s1075 = scalar_lea.vmem %s1, %s1074
    %1076 = vst [vmem:[%s1075] sm:%s1073] %v1072
    %s1077 = scalar_lea.vmem [#allocation0], 136
    %v1078 = vld [vmem:[%s1077] sm:%s977]
    %s1079 = sshllo.u32 0, 2
    %s1080 = smul.addr 2, 17
    %s1081 = scalar_lea.vmem %s1, %s1080
    %1082 = vst [vmem:[%s1081] sm:%s1079] %v1078

// kernel: basic_block_forward.3
$region0: #{basic_block_forward.3}
  #allocation0 [shape = 'u32[]', space=smem, size = 0x4, offset = 0x4, fixed_abs, tag = 'smem constant byte address 0x4 - core index']
  #allocation1 [shape = 'u32[144,128]{1,0:T(1,128)}', space=vmem, size = 0x12000, scoped, tag = 'internal scratch']
  %s0 = inlined_call_operand.vmem [shape: f32[2,4,290], index: 0, kind: input, shape index: {}]
  %s1 = inlined_call_operand.vmem [shape: f32[18,36], index: 1, kind: input, shape index: {}]
  %s2 = inlined_call_operand.vmem [shape: f32[18,1], index: 2, kind: input, shape index: {}]
  %s3 = inlined_call_operand.vmem [shape: f32[2,256], index: 3, kind: input, shape index: {}]
  %s4 = inlined_call_operand.vmem [shape: f32[2,18,256], index: 4, kind: output, shape index: {}]
  %s5 = sld [smem:[#allocation0]]
  $region49: #{basic_block_forward.3} parent=0
    _
  %s7 = ssub.s32 1, %s5
  %s8 = scalar_select 0, %s7, %s5
  loop: start=0, step=1, limit=4
  $region2: #{basic_block_forward.3} parent=0 // loop_pre_header
    _
  $region3: #{basic_block_forward.3} parent=0 // loop_header
    %s10 = sphi 0, %s14
    %p11 = scmp.ge.s32.totalorder %s10, 4
    %s20 = sphi 0, %s22
    %s23 = sphi 0, %s20
    %s24 = sphi 0, %s23
    %s40 = sphi 0, %s24
    %s44 = sphi 0, %s44
    %s46 = sphi 0, %s44
    %s47 = sphi 0, %s46
    %s61 = sphi 0, %s47
    %s65 = sphi 0, %s65
    %s67 = sphi 0, %s65
    %s68 = sphi 0, %s67
    %s82 = sphi 0, %s68
    %s86 = sphi 0, %s86
    %s88 = sphi 0, %s86
    %s89 = sphi 0, %s88
    %s103 = sphi 0, %s89
    %s109 = sphi 0, %s111
    %s112 = sphi 0, %s109
    %s113 = sphi 0, %s112
    %s129 = sphi 0, %s113
  $region4: #{basic_block_forward.3} parent=0 // loop_header_branch
    %13 = sbr.rel (%p11) target = $region8
  $region5: #{basic_block_forward.3} parent=0 // loop_body
    %s15 = ssub.s32 %s10, 1
    %s16 = ssub.s32 %s10, 2
    %s17 = sadd.s32 %s10, 1
    %s18 = ssub.s32 %s10, %s17
    %p19 = scmp.eq.s32.totalorder %s18, 0
    %s21 = sadd.s32 %s20, 1
    %s22 = scalar_select %p19, %s20, %s21
    %p25 = pneg %p19
    %p26 = scmp.eq.s32.totalorder %s10, 1
    %p27 = por %p25, %p26
    %p28 = scmp.ne.s32.totalorder %s20, %s23
    %p29 = scmp.eq.s32.totalorder %s10, 0
    %p30 = por %p28, %p29
    %p31 = scmp.ne.s32.totalorder %s20, %s23
    %p32 = scmp.eq.s32.totalorder %s15, 1
    %p33 = por %p31, %p32
    %p34 = scmp.ne.s32.totalorder %s23, %s24
    %p35 = scmp.eq.s32.totalorder %s15, 0
    %p36 = por %p34, %p35
    %p37 = scmp.ne.s32.totalorder %s23, %s24
    %p38 = scmp.eq.s32.totalorder %s16, 1
    %p39 = por %p37, %p38
    %p41 = scmp.ne.s32.totalorder %s24, %s40
    %p42 = scmp.eq.s32.totalorder %s16, 0
    %p43 = por %p41, %p42
    %s45 = sadd.s32 %s44, 1
    %p48 = scmp.eq.s32.totalorder %s10, 1
    %p49 = scmp.ne.s32.totalorder %s44, %s46
    %p50 = scmp.eq.s32.totalorder %s10, 0
    %p51 = por %p49, %p50
    %p52 = scmp.ne.s32.totalorder %s44, %s46
    %p53 = scmp.eq.s32.totalorder %s15, 1
    %p54 = por %p52, %p53
    %p55 = scmp.ne.s32.totalorder %s46, %s47
    %p56 = scmp.eq.s32.totalorder %s15, 0
    %p57 = por %p55, %p56
    %p58 = scmp.ne.s32.totalorder %s46, %s47
    %p59 = scmp.eq.s32.totalorder %s16, 1
    %p60 = por %p58, %p59
    %p62 = scmp.ne.s32.totalorder %s47, %s61
    %p63 = scmp.eq.s32.totalorder %s16, 0
    %p64 = por %p62, %p63
    %s66 = sadd.s32 %s65, 1
    %p69 = scmp.eq.s32.totalorder %s10, 1
    %p70 = scmp.ne.s32.totalorder %s65, %s67
    %p71 = scmp.eq.s32.totalorder %s10, 0
    %p72 = por %p70, %p71
    %p73 = scmp.ne.s32.totalorder %s65, %s67
    %p74 = scmp.eq.s32.totalorder %s15, 1
    %p75 = por %p73, %p74
    %p76 = scmp.ne.s32.totalorder %s67, %s68
    %p77 = scmp.eq.s32.totalorder %s15, 0
    %p78 = por %p76, %p77
    %p79 = scmp.ne.s32.totalorder %s67, %s68
    %p80 = scmp.eq.s32.totalorder %s16, 1
    %p81 = por %p79, %p80
    %p83 = scmp.ne.s32.totalorder %s68, %s82
    %p84 = scmp.eq.s32.totalorder %s16, 0
    %p85 = por %p83, %p84
    %s87 = sadd.s32 %s86, 1
    %p90 = scmp.eq.s32.totalorder %s10, 1
    %p91 = scmp.ne.s32.totalorder %s86, %s88
    %p92 = scmp.eq.s32.totalorder %s10, 0
    %p93 = por %p91, %p92
    %p94 = scmp.ne.s32.totalorder %s86, %s88
    %p95 = scmp.eq.s32.totalorder %s15, 1
    %p96 = por %p94, %p95
    %p97 = scmp.ne.s32.totalorder %s88, %s89
    %p98 = scmp.eq.s32.totalorder %s15, 0
    %p99 = por %p97, %p98
    %p100 = scmp.ne.s32.totalorder %s88, %s89
    %p101 = scmp.eq.s32.totalorder %s16, 1
    %p102 = por %p100, %p101
    %p104 = scmp.ne.s32.totalorder %s89, %s103
    %p105 = scmp.eq.s32.totalorder %s16, 0
    %p106 = por %p104, %p105
    %s107 = ssub.s32 %s10, %s17
    %p108 = scmp.eq.s32.totalorder %s107, 0
    %s110 = sadd.s32 %s109, 1
    %s111 = scalar_select %p108, %s109, %s110
    %p114 = pneg %p108
    %p115 = scmp.eq.s32.totalorder %s10, 1
    %p116 = por %p114, %p115
    %p117 = scmp.ne.s32.totalorder %s109, %s112
    %p118 = scmp.eq.s32.totalorder %s10, 0
    %p119 = por %p117, %p118
    %p120 = scmp.ne.s32.totalorder %s109, %s112
    %p121 = scmp.eq.s32.totalorder %s15, 1
    %p122 = por %p120, %p121
    %p123 = scmp.ne.s32.totalorder %s112, %s113
    %p124 = scmp.eq.s32.totalorder %s15, 0
    %p125 = por %p123, %p124
    %p126 = scmp.ne.s32.totalorder %s112, %s113
    %p127 = scmp.eq.s32.totalorder %s16, 1
    %p128 = por %p126, %p127
    %p130 = scmp.ne.s32.totalorder %s113, %s129
    %p131 = scmp.eq.s32.totalorder %s16, 0
    %p132 = por %p130, %p131
    %p133 = scmp.le.s32.totalorder 1, %s10
    %p134 = scmp.lt.s32.totalorder %s10, 3
    %p135 = pnand %p133, %p134
    %p136 = pneg %p135
    // Predicated region
    $region9: #{basic_block_forward.3} parent=5 // pred_check
      _
    $region10: #{basic_block_forward.3} parent=5 // pred_check_branch
      %138 = sbr.rel (%p135) target = $region12
    $region11: #{basic_block_forward.3} parent=5 // pred_region
      %s139 = ssub.s32 %s10, 1
      // Predicated region
      $region13: #{basic_block_forward.3} parent=11 // pred_check
        %p140 = pneg %p57
      $region14: #{basic_block_forward.3} parent=11 // pred_check_branch
        %142 = sbr.rel (%p140) target = $region16
      $region15: #{basic_block_forward.3} parent=11 // pred_region
        _
      $region16: #{basic_block_forward.3} parent=11 // pred_fallthru
        _
      // Predicated region
      $region17: #{basic_block_forward.3} parent=11 // pred_check
        %p143 = pneg %p78
      $region18: #{basic_block_forward.3} parent=11 // pred_check_branch
        %145 = sbr.rel (%p143) target = $region20
      $region19: #{basic_block_forward.3} parent=11 // pred_region
        _
      $region20: #{basic_block_forward.3} parent=11 // pred_fallthru
        _
      // Predicated region
      $region21: #{basic_block_forward.3} parent=11 // pred_check
        %p146 = pneg %p99
      $region22: #{basic_block_forward.3} parent=11 // pred_check_branch
        %148 = sbr.rel (%p146) target = $region24
      $region23: #{basic_block_forward.3} parent=11 // pred_region
        _
      $region24: #{basic_block_forward.3} parent=11 // pred_fallthru
        _
    $region12: #{basic_block_forward.3} parent=5 // pred_fallthru
      _
    %p149 = scmp.lt.s32.totalorder %s10, 2
    // Predicated region
    $region25: #{basic_block_forward.3} parent=5 // pred_check
      %p150 = pneg %p149
    $region26: #{basic_block_forward.3} parent=5 // pred_check_branch
      %152 = sbr.rel (%p150) target = $region28
    $region27: #{basic_block_forward.3} parent=5 // pred_region
      // Predicated region
      $region29: #{basic_block_forward.3} parent=27 // pred_check
        %p153 = pneg %p30
      $region30: #{basic_block_forward.3} parent=27 // pred_check_branch
        %155 = sbr.rel (%p153) target = $region32
      $region31: #{basic_block_forward.3} parent=27 // pred_region
        %p156 = scmp.lt.s32.totalorder %s10, 1
        %s157 = scalar_select %p156, %s10, 1
        %s158 = smul.addr %s157, 3
        %s159 = smul.addr %s158, 4
        %s160 = scalar_lea.vmem %s0, %s159
      $region32: #{basic_block_forward.3} parent=27 // pred_fallthru
        _
    $region28: #{basic_block_forward.3} parent=5 // pred_fallthru
      _
    %p161 = scmp.le.s32.totalorder 1, %s10
    %p162 = scmp.lt.s32.totalorder %s10, 3
    %p163 = pnand %p161, %p162
    %p164 = pneg %p163
    // Predicated region
    $region33: #{basic_block_forward.3} parent=5 // pred_check
      _
    $region34: #{basic_block_forward.3} parent=5 // pred_check_branch
      %166 = sbr.rel (%p163) target = $region36
    $region35: #{basic_block_forward.3} parent=5 // pred_region
      %s167 = ssub.s32 %s10, 1
      %p168 = scmp.lt.s32.totalorder %s15, 1
      %s169 = scalar_select %p168, %s15, 1
      %s170 = smul.addr %s169, 3
      %s171 = smul.addr %s170, 4
      %s172 = scalar_lea.vmem %s0, %s171
      %p173 = pneg %p36
      %p174 = pneg %p33
      %p175 = pneg %p57
      %p176 = pneg %p54
      %p177 = pneg %p78
      %p178 = pneg %p75
      %p179 = pneg %p99
      %p180 = pneg %p96
      %p181 = pneg %p125
      %p182 = pneg %p122
      %p183 = scmp.lt.s32.totalorder %s15, 1
      %s184 = scalar_select %p183, %s15, 1
      %s185 = smul.addr %s184, 6
      %s186 = smul.addr %s185, 8
      %s187 = scalar_lea.vmem %s4, %s186
      %p188 = scmp.lt.s32.totalorder %s15, 1
      %s189 = scalar_select %p188, %s15, 1
      %s190 = smul.addr %s189, 3
      %s191 = smul.addr %s190, 4
      %s192 = scalar_lea.vmem %s0, %s191
      %p193 = scmp.lt.s32.totalorder %s15, 1
      %s194 = scalar_select %p193, %s15, 1
      %s195 = smul.addr %s194, 6
      %s196 = smul.addr %s195, 8
      %s197 = scalar_lea.vmem %s4, %s196
      %v198 = vld [vmem:[%s192] sm:$0xff]
      %v199 = vld [vmem:[%s192 + $0x8] sm:$0xf]
      %v200 = vld [vmem:[%s3] ss:$2 sm:$0x3]
      %s201 = scalar_lea.vmem %s3, 1
      %v202 = vld [vmem:[%s201] ss:$2 sm:$0x3]
      %v204 = vlaneseq
      %v205 = vshrl.u32 %v204, 7
      %v206 = vsub.s32 0, %v205
      %v207 = vrot.slane %v200, %v206
      %v208 = vlaneseq
      %v209 = vshrl.u32 %v208, 7
      %v210 = vsub.s32 1, %v209
      %v211 = vrot.slane %v200, %v210
      %v212 = vcombine.low %v207, %v211
      %v214 = vmul.f32 %v198, %v212
      %v216 = vlaneseq
      %v217 = vshrl.u32 %v216, 7
      %v218 = vsub.s32 0, %v217
      %v219 = vrot.slane %v202, %v218
      %v220 = vlaneseq
      %v221 = vshrl.u32 %v220, 7
      %v222 = vsub.s32 1, %v221
      %v223 = vrot.slane %v202, %v222
      %v224 = vcombine.low %v219, %v223
      %225 = vrot.lane.b32.xlu0 %v224, 2
      %v226 = vpop.permute.xlu0 %225
      %v227 = vrot.slane %v226, 4
      %vm228 = vcmask 15360
      %v229 = vsel %vm228, %v227, %v226
      %v232 = vmul.f32 %v198, %v229
      %v233 = vmul.f32 %v199, %v227
      %234 = vrot.lane.b32.xlu0 %v212, 16
      %v235 = vpop.permute.xlu0 %234
      %v236 = vrot.slane %v235, 4
      %vm237 = vcmask 130048
      %v238 = vsel %vm237, %v236, %v235
      %v241 = vmul.f32 %v198, %v238
      %v242 = vmul.f32 %v199, %v236
      %243 = vrot.lane.b32.xlu0 %v224, 18
      %v244 = vpop.permute.xlu0 %243
      %v245 = vrot.slane %v244, 4
      %vm246 = vcmask 146432
      %v247 = vsel %vm246, %v245, %v244
      %v250 = vmul.f32 %v198, %v247
      %v251 = vmul.f32 %v199, %v245
      %252 = vrot.lane.b32.xlu0 %v212, 32
      %v253 = vpop.permute.xlu0 %252
      %v254 = vrot.slane %v253, 4
      %vm255 = vcmask 261120
      %v256 = vsel %vm255, %v254, %v253
      %v259 = vmul.f32 %v198, %v256
      %v260 = vmul.f32 %v199, %v254
      %261 = vrot.lane.b32.xlu0 %v224, 34
      %v262 = vpop.permute.xlu0 %261
      %v263 = vrot.slane %v262, 4
      %vm264 = vcmask 277504
      %v265 = vsel %vm264, %v263, %v262
      %v268 = vmul.f32 %v198, %v265
      %v269 = vmul.f32 %v199, %v263
      %v271 = vcombine.high %v214, %v214
      %v275 = vcombine.low %v198, %v198
      %v276 = vcombine.low %v199, %v199
      %277 = vrot.lane.b32.xlu0 %v275, 127
      %v278 = vpop.permute.xlu0 %277
      %279 = vrot.lane.b32.xlu0 %v198, 127
      %v280 = vpop.permute.xlu0 %279
      %281 = vrot.lane.b32.xlu0 %v276, 127
      %v282 = vpop.permute.xlu0 %281
      %vm283 = vcmask 1039360
      %v284 = vsel %vm283, %v278, %v280
      %v285 = vsel %vm283, %v280, %v282
      %v290 = vcombine.high %v232, %v232
      %291 = vrot.lane.b32.xlu0 %v232, 126
      %v292 = vpop.permute.xlu0 %291
      %293 = vrot.lane.b32.xlu0 %v290, 126
      %v294 = vpop.permute.xlu0 %293
      %295 = vrot.lane.b32.xlu0 %v233, 126
      %v296 = vpop.permute.xlu0 %295
      %vm297 = vcmask 1031168
      %v298 = vsel %vm297, %v292, %v294
      %v299 = vsel %vm297, %v294, %v296
      %v304 = vcombine.low %v241, %v241
      %v305 = vcombine.low %v242, %v242
      %306 = vrot.lane.b32.xlu0 %v304, 112
      %v307 = vpop.permute.xlu0 %306
      %308 = vrot.lane.b32.xlu0 %v241, 112
      %v309 = vpop.permute.xlu0 %308
      %310 = vrot.lane.b32.xlu0 %v305, 112
      %v311 = vpop.permute.xlu0 %310
      %vm312 = vcmask 916480
      %v313 = vsel %vm312, %v307, %v309
      %v314 = vsel %vm312, %v309, %v311
      %v317 = vcombine.high %v198, %v198
      %318 = vrot.lane.b32.xlu0 %v198, 111
      %v319 = vpop.permute.xlu0 %318
      %320 = vrot.lane.b32.xlu0 %v317, 111
      %v321 = vpop.permute.xlu0 %320
      %322 = vrot.lane.b32.xlu0 %v199, 111
      %v323 = vpop.permute.xlu0 %322
      %vm324 = vcmask 908288
      %v325 = vsel %vm324, %v319, %v321
      %v326 = vsel %vm324, %v321, %v323
      %v331 = vcombine.low %v250, %v250
      %v332 = vcombine.low %v251, %v251
      %333 = vrot.lane.b32.xlu0 %v331, 110
      %v334 = vpop.permute.xlu0 %333
      %335 = vrot.lane.b32.xlu0 %v250, 110
      %v336 = vpop.permute.xlu0 %335
      %337 = vrot.lane.b32.xlu0 %v332, 110
      %v338 = vpop.permute.xlu0 %337
      %vm339 = vcmask 900096
      %v340 = vsel %vm339, %v334, %v336
      %v341 = vsel %vm339, %v336, %v338
      %v346 = vcombine.high %v259, %v259
      %347 = vrot.lane.b32.xlu0 %v259, 96
      %v348 = vpop.permute.xlu0 %347
      %349 = vrot.lane.b32.xlu0 %v346, 96
      %v350 = vpop.permute.xlu0 %349
      %351 = vrot.lane.b32.xlu0 %v260, 96
      %v352 = vpop.permute.xlu0 %351
      %vm353 = vcmask 785408
      %v354 = vsel %vm353, %v348, %v350
      %v355 = vsel %vm353, %v350, %v352
      %358 = vrot.lane.b32.xlu0 %v275, 95
      %v359 = vpop.permute.xlu0 %358
      %360 = vrot.lane.b32.xlu0 %v198, 95
      %v361 = vpop.permute.xlu0 %360
      %362 = vrot.lane.b32.xlu0 %v276, 95
      %v363 = vpop.permute.xlu0 %362
      %vm364 = vcmask 777216
      %v365 = vsel %vm364, %v359, %v361
      %v366 = vsel %vm364, %v361, %v363
      %v371 = vcombine.high %v268, %v268
      %372 = vrot.lane.b32.xlu0 %v268, 94
      %v373 = vpop.permute.xlu0 %372
      %374 = vrot.lane.b32.xlu0 %v371, 94
      %v375 = vpop.permute.xlu0 %374
      %376 = vrot.lane.b32.xlu0 %v269, 94
      %v377 = vpop.permute.xlu0 %376
      %vm378 = vcmask 769024
      %v379 = vsel %vm378, %v373, %v375
      %v380 = vsel %vm378, %v375, %v377
      %vm381 = vcmask 1043456
      %v382 = vsel %vm381, %v214, %v284
      %v383 = vsel %vm381, %v271, %v285
      %v384 = vsel %vm381, %v298, %v313
      %v385 = vsel %vm381, %v299, %v314
      %v386 = vsel %vm381, %v325, %v340
      %v387 = vsel %vm381, %v326, %v341
      %v388 = vsel %vm381, %v354, %v365
      %v389 = vsel %vm381, %v355, %v366
      %v390 = vld [vmem:[%s1] sm:$0xff]
      %v391 = vld [vmem:[%s1 + $0x8] sm:$0xff]
      %v392 = vld [vmem:[%s1 + $0x10] sm:$0x3]
      %v393 = vld [vmem:[%s2] sm:$0xff]
      %v394 = vld [vmem:[%s2 + $0x8] sm:$0xff]
      %v395 = vld [vmem:[%s2 + $0x10] sm:$0x3]
      %397 = vset.pattern.permute.xlu0 0
      %398 = vperm.xlu0 %397, %v393
      %v399 = vpop.permute.xlu0 %398
      %402 = vset.pattern.permute.xlu0 0
      %403 = vperm.xlu0 %402, %v394
      %v404 = vpop.permute.xlu0 %403
      %407 = vset.pattern.permute.xlu0 0
      %408 = vperm.xlu0 %407, %v395
      %v409 = vpop.permute.xlu0 %408
      %vm411 = vcmask 293888
      %v413 = vsel %vm411, %v390, 0
      %v416 = vsel %vm411, %v391, 0
      %v419 = vsel %vm411, %v392, 0
      %v421 = vsel %vm381, %v379, 0
      %v423 = vsel %vm381, %v380, 0
      %425 = vmatprep.subr.mxu0 %v383
      %426 = vmatpush1.msra.mxu0 %v382
      %427 = vmatprep.subr.mxu0 %v385
      %428 = vmatpush1.msra.mxu0 %v384
      %429 = vmatprep.subr.mxu0 %v387
      %430 = vmatpush1.msra.mxu0 %v386
      %431 = vmatprep.subr.mxu0 %v389
      %432 = vmatpush1.msra.mxu0 %v388
      %433 = vmatprep.subr.mxu0 %v423
      %434 = vmatpush1.msra.mxu0 %v421
      %435 = vmatprep.subr.mxu0 0.0
      %436 = vmatpush1.msra.mxu0 0.0
      %437 = vmatprep.subr.mxu0 0.0
      %438 = vmatpush1.msra.mxu0 0.0
      %439 = vmatprep.subr.mxu0 0.0
      %440 = vmatpush1.msra.mxu0 0.0
      %441 = vmatprep.subr.mxu0 0.0
      %442 = vmatpush1.msra.mxu0 0.0
      %443 = vmatprep.subr.mxu0 0.0
      %444 = vmatpush1.msra.mxu0 0.0
      %445 = vmatprep.subr.mxu0 0.0
      %446 = vmatpush1.msra.mxu0 0.0
      %447 = vmatprep.subr.mxu0 0.0
      %448 = vmatpush1.msra.mxu0 0.0
      %449 = vmatprep.subr.mxu0 0.0
      %450 = vmatpush1.msra.mxu0 0.0
      %451 = vmatprep.subr.mxu0 0.0
      %452 = vmatpush1.msra.mxu0 0.0
      %453 = vmatprep.subr.mxu0 0.0
      %454 = vmatpush1.msra.mxu0 0.0
      %455 = vmatprep.subr.mxu0 0.0
      %456 = vmatpush1.msra.mxu0 0.0
      %457 = vmatprep.subr.mxu0 0.0
      %458 = vmatpush1.msra.mxu0 0.0
      %459 = vmatprep.subr.mxu0 0.0
      %460 = vmatpush1.msra.mxu0 0.0
      %461 = vmatprep.subr.mxu0 0.0
      %462 = vmatpush1.msra.mxu0 0.0
      %463 = vmatprep.subr.mxu0 0.0
      %464 = vmatpush1.msra.mxu0 0.0
      %465 = vmatprep.subr.mxu0 0.0
      %466 = vmatpush1.msra.mxu0 0.0
      %467 = vmatprep.subr.mxu0 0.0
      %468 = vmatpush1.msra.mxu0 0.0
      %469 = vmatprep.subr.mxu0 0.0
      %470 = vmatpush1.msra.mxu0 0.0
      %471 = vmatprep.subr.mxu0 0.0
      %472 = vmatpush1.msra.mxu0 0.0
      %473 = vmatprep.subr.mxu0 0.0
      %474 = vmatpush1.msra.mxu0 0.0
      %475 = vmatprep.subr.mxu0 0.0
      %476 = vmatpush1.msra.mxu0 0.0
      %477 = vmatprep.subr.mxu0 0.0
      %478 = vmatpush1.msra.mxu0 0.0
      %479 = vmatprep.subr.mxu0 0.0
      %480 = vmatpush1.msra.mxu0 0.0
      %481 = vmatprep.subr.mxu0 0.0
      %482 = vmatpush1.msra.mxu0 0.0
      %483 = vmatprep.subr.mxu0 0.0
      %484 = vmatpush1.msra.mxu0 0.0
      %485 = vmatprep.subr.mxu0 0.0
      %486 = vmatpush1.msra.mxu0 0.0
      %487 = vmatprep.subr.mxu0 0.0
      %488 = vmatpush1.msra.mxu0 0.0
      %489 = vmatprep.mubr.f32.mxu0 0.0
      %490 = vmatmul.mubr.f32.gmra.mrb[0].mxu0 %v413
      %v491 = vpop.f32.mrb[0].mxu0
      %v492 = vadd.f32 %v399, %v491
      %v493 = vpop.f32.mrb[0].mxu0
      %v494 = vadd.f32 %v399, %v493
      %495 = vmatprep.mubr.f32.mxu0 0.0
      %496 = vmatmul.mubr.f32.gmra.mrb[0].mxu0 %v416
      %v497 = vpop.f32.mrb[0].mxu0
      %v498 = vadd.f32 %v404, %v497
      %v499 = vpop.f32.mrb[0].mxu0
      %v500 = vadd.f32 %v404, %v499
      %501 = vmatprep.mubr.f32.mxu0 0.0
      %502 = vmatmul.mubr.f32.gmra.mrb[0].mxu0 %v419
      %v503 = vpop.f32.mrb[0].mxu0
      %v504 = vadd.f32 %v409, %v503
      %v505 = vpop.f32.mrb[0].mxu0
      %v506 = vadd.f32 %v409, %v505
      %507 = vdwg.mxu0
      %508 = vst [vmem:[%s197] sm:$0xff] %v492
      %509 = vst [vmem:[%s197 + $0x8] sm:$0xff] %v494
      %510 = vst [vmem:[%s197 + $0x10] sm:$0xff] %v498
      %511 = vst [vmem:[%s197 + $0x18] sm:$0xff] %v500
      %512 = vst [vmem:[%s197 + $0x20] sm:$0x3] %v504
      %513 = vst [vmem:[%s197 + $0x28] sm:$0x3] %v506
      %p514 = scmp.lt.s32.totalorder %s15, 1
      %s515 = scalar_select %p514, %s15, 1
      %s516 = smul.addr %s515, 6
      %s517 = smul.addr %s516, 8
      %s518 = scalar_lea.vmem %s4, %s517
      // Predicated region
      $region37: #{basic_block_forward.3} parent=35 // pred_check
        %p519 = pneg %p122
      $region38: #{basic_block_forward.3} parent=35 // pred_check_branch
        %521 = sbr.rel (%p519) target = $region40
      $region39: #{basic_block_forward.3} parent=35 // pred_region
        _
      $region40: #{basic_block_forward.3} parent=35 // pred_fallthru
        _
    $region36: #{basic_block_forward.3} parent=5 // pred_fallthru
      _
    %p522 = scmp.le.s32.totalorder 2, %s10
    // Predicated region
    $region41: #{basic_block_forward.3} parent=5 // pred_check
      %p523 = pneg %p522
    $region42: #{basic_block_forward.3} parent=5 // pred_check_branch
      %525 = sbr.rel (%p523) target = $region44
    $region43: #{basic_block_forward.3} parent=5 // pred_region
      %s526 = ssub.s32 %s10, 2
      // Predicated region
      $region45: #{basic_block_forward.3} parent=43 // pred_check
        %p527 = pneg %p128
      $region46: #{basic_block_forward.3} parent=43 // pred_check_branch
        %529 = sbr.rel (%p527) target = $region48
      $region47: #{basic_block_forward.3} parent=43 // pred_region
        %p530 = scmp.lt.s32.totalorder %s16, 1
        %s531 = scalar_select %p530, %s16, 1
        %s532 = smul.addr %s531, 6
        %s533 = smul.addr %s532, 8
        %s534 = scalar_lea.vmem %s4, %s533
      $region48: #{basic_block_forward.3} parent=43 // pred_fallthru
        _
    $region44: #{basic_block_forward.3} parent=5 // pred_fallthru
      _
  $region6: #{basic_block_forward.3} parent=0 // loop_footer
    %s14 = sadd.s32 1, %s10
  $region7: #{basic_block_forward.3} parent=0 // loop_footer_branch
    %9 = sbr.rel target = $region3
  $region8: #{basic_block_forward.3} parent=0 // loop_exit
    _

// kernel: basic_block_forward.4
$region0: #{basic_block_forward.4}
  #allocation0 [shape = 'u32[]', space=smem, size = 0x4, offset = 0x4, fixed_abs, tag = 'smem constant byte address 0x4 - core index']
  #allocation1 [shape = 'u32[144,128]{1,0:T(1,128)}', space=vmem, size = 0x12000, scoped, tag = 'internal scratch']
  %s0 = inlined_call_operand.vmem [shape: bf16[2,36,256], index: 0, kind: input, shape index: {}]
  %s1 = inlined_call_operand.vmem [shape: bf16[4,36], index: 1, kind: input, shape index: {}]
  %s2 = inlined_call_operand.vmem [shape: f32[4,1], index: 2, kind: input, shape index: {}]
  %s3 = inlined_call_operand.vmem [shape: f32[4,1], index: 3, kind: input, shape index: {}]
  %s4 = inlined_call_operand.vmem [shape: f32[2,4,256], index: 4, kind: input, shape index: {}]
  %s5 = inlined_call_operand.vmem [shape: bf16[2,4,256], index: 5, kind: output, shape index: {}]
  %s6 = sld [smem:[#allocation0]]
  $region53: #{basic_block_forward.4} parent=0
    _
  %s8 = ssub.s32 1, %s6
  %s9 = scalar_select 0, %s8, %s6
  loop: start=0, step=1, limit=4
  $region2: #{basic_block_forward.4} parent=0 // loop_pre_header
    _
  $region3: #{basic_block_forward.4} parent=0 // loop_header
    %s11 = sphi 0, %s15
    %p12 = scmp.ge.s32.totalorder %s11, 4
    %s18 = sphi 0, %s30
    %s19 = sphi 0, %s26
    %s20 = sphi 0, %s18
    %s21 = sphi 0, %s19
    %s22 = sphi 0, %s20
    %s23 = sphi 0, %s21
    %s35 = sphi 0, %s37
    %s38 = sphi 0, %s35
    %s39 = sphi 0, %s38
    %s55 = sphi 0, %s39
    %s59 = sphi 0, %s59
    %s61 = sphi 0, %s59
    %s62 = sphi 0, %s61
    %s76 = sphi 0, %s62
    %s80 = sphi 0, %s80
    %s82 = sphi 0, %s80
    %s83 = sphi 0, %s82
    %s97 = sphi 0, %s83
    %s101 = sphi 0, %s101
    %s103 = sphi 0, %s101
    %s104 = sphi 0, %s103
    %s118 = sphi 0, %s104
    %s126 = sphi 0, %s128
    %s129 = sphi 0, %s126
    %s130 = sphi 0, %s129
    %s146 = sphi 0, %s130
    %s154 = sphi 0, %s156
    %s157 = sphi 0, %s154
    %s158 = sphi 0, %s157
    %s174 = sphi 0, %s158
  $region4: #{basic_block_forward.4} parent=0 // loop_header_branch
    %14 = sbr.rel (%p12) target = $region8
  $region5: #{basic_block_forward.4} parent=0 // loop_body
    %s16 = ssub.s32 %s11, 1
    %s17 = ssub.s32 %s11, 2
    %s24 = sadd.s32 1, %s19
    %p25 = scmp.ge.s32.totalorder %s24, 1
    %s26 = scalar_select %p25, 0, %s24
    %s27 = sadd.s32 1, %s18
    %s28 = scalar_select %p25, %s27, %s18
    %p29 = scmp.ge.s32.totalorder %s28, 2
    %s30 = scalar_select %p29, 0, %s28
    %s31 = ssub.s32 %s18, %s30
    %s32 = ssub.s32 %s19, %s26
    %s33 = sor.u32 %s31, %s32
    %p34 = scmp.eq.s32.totalorder %s33, 0
    %s36 = sadd.s32 %s35, 1
    %s37 = scalar_select %p34, %s35, %s36
    %p40 = pneg %p34
    %p41 = scmp.eq.s32.totalorder %s11, 1
    %p42 = por %p40, %p41
    %p43 = scmp.ne.s32.totalorder %s35, %s38
    %p44 = scmp.eq.s32.totalorder %s11, 0
    %p45 = por %p43, %p44
    %p46 = scmp.ne.s32.totalorder %s35, %s38
    %p47 = scmp.eq.s32.totalorder %s16, 1
    %p48 = por %p46, %p47
    %p49 = scmp.ne.s32.totalorder %s38, %s39
    %p50 = scmp.eq.s32.totalorder %s16, 0
    %p51 = por %p49, %p50
    %p52 = scmp.ne.s32.totalorder %s38, %s39
    %p53 = scmp.eq.s32.totalorder %s17, 1
    %p54 = por %p52, %p53
    %p56 = scmp.ne.s32.totalorder %s39, %s55
    %p57 = scmp.eq.s32.totalorder %s17, 0
    %p58 = por %p56, %p57
    %s60 = sadd.s32 %s59, 1
    %p63 = scmp.eq.s32.totalorder %s11, 1
    %p64 = scmp.ne.s32.totalorder %s59, %s61
    %p65 = scmp.eq.s32.totalorder %s11, 0
    %p66 = por %p64, %p65
    %p67 = scmp.ne.s32.totalorder %s59, %s61
    %p68 = scmp.eq.s32.totalorder %s16, 1
    %p69 = por %p67, %p68
    %p70 = scmp.ne.s32.totalorder %s61, %s62
    %p71 = scmp.eq.s32.totalorder %s16, 0
    %p72 = por %p70, %p71
    %p73 = scmp.ne.s32.totalorder %s61, %s62
    %p74 = scmp.eq.s32.totalorder %s17, 1
    %p75 = por %p73, %p74
    %p77 = scmp.ne.s32.totalorder %s62, %s76
    %p78 = scmp.eq.s32.totalorder %s17, 0
    %p79 = por %p77, %p78
    %s81 = sadd.s32 %s80, 1
    %p84 = scmp.eq.s32.totalorder %s11, 1
    %p85 = scmp.ne.s32.totalorder %s80, %s82
    %p86 = scmp.eq.s32.totalorder %s11, 0
    %p87 = por %p85, %p86
    %p88 = scmp.ne.s32.totalorder %s80, %s82
    %p89 = scmp.eq.s32.totalorder %s16, 1
    %p90 = por %p88, %p89
    %p91 = scmp.ne.s32.totalorder %s82, %s83
    %p92 = scmp.eq.s32.totalorder %s16, 0
    %p93 = por %p91, %p92
    %p94 = scmp.ne.s32.totalorder %s82, %s83
    %p95 = scmp.eq.s32.totalorder %s17, 1
    %p96 = por %p94, %p95
    %p98 = scmp.ne.s32.totalorder %s83, %s97
    %p99 = scmp.eq.s32.totalorder %s17, 0
    %p100 = por %p98, %p99
    %s102 = sadd.s32 %s101, 1
    %p105 = scmp.eq.s32.totalorder %s11, 1
    %p106 = scmp.ne.s32.totalorder %s101, %s103
    %p107 = scmp.eq.s32.totalorder %s11, 0
    %p108 = por %p106, %p107
    %p109 = scmp.ne.s32.totalorder %s101, %s103
    %p110 = scmp.eq.s32.totalorder %s16, 1
    %p111 = por %p109, %p110
    %p112 = scmp.ne.s32.totalorder %s103, %s104
    %p113 = scmp.eq.s32.totalorder %s16, 0
    %p114 = por %p112, %p113
    %p115 = scmp.ne.s32.totalorder %s103, %s104
    %p116 = scmp.eq.s32.totalorder %s17, 1
    %p117 = por %p115, %p116
    %p119 = scmp.ne.s32.totalorder %s104, %s118
    %p120 = scmp.eq.s32.totalorder %s17, 0
    %p121 = por %p119, %p120
    %s122 = ssub.s32 %s18, %s30
    %s123 = ssub.s32 %s19, %s26
    %s124 = sor.u32 %s122, %s123
    %p125 = scmp.eq.s32.totalorder %s124, 0
    %s127 = sadd.s32 %s126, 1
    %s128 = scalar_select %p125, %s126, %s127
    %p131 = pneg %p125
    %p132 = scmp.eq.s32.totalorder %s11, 1
    %p133 = por %p131, %p132
    %p134 = scmp.ne.s32.totalorder %s126, %s129
    %p135 = scmp.eq.s32.totalorder %s11, 0
    %p136 = por %p134, %p135
    %p137 = scmp.ne.s32.totalorder %s126, %s129
    %p138 = scmp.eq.s32.totalorder %s16, 1
    %p139 = por %p137, %p138
    %p140 = scmp.ne.s32.totalorder %s129, %s130
    %p141 = scmp.eq.s32.totalorder %s16, 0
    %p142 = por %p140, %p141
    %p143 = scmp.ne.s32.totalorder %s129, %s130
    %p144 = scmp.eq.s32.totalorder %s17, 1
    %p145 = por %p143, %p144
    %p147 = scmp.ne.s32.totalorder %s130, %s146
    %p148 = scmp.eq.s32.totalorder %s17, 0
    %p149 = por %p147, %p148
    %s150 = ssub.s32 %s18, %s30
    %s151 = ssub.s32 %s19, %s26
    %s152 = sor.u32 %s150, %s151
    %p153 = scmp.eq.s32.totalorder %s152, 0
    %s155 = sadd.s32 %s154, 1
    %s156 = scalar_select %p153, %s154, %s155
    %p159 = pneg %p153
    %p160 = scmp.eq.s32.totalorder %s11, 1
    %p161 = por %p159, %p160
    %p162 = scmp.ne.s32.totalorder %s154, %s157
    %p163 = scmp.eq.s32.totalorder %s11, 0
    %p164 = por %p162, %p163
    %p165 = scmp.ne.s32.totalorder %s154, %s157
    %p166 = scmp.eq.s32.totalorder %s16, 1
    %p167 = por %p165, %p166
    %p168 = scmp.ne.s32.totalorder %s157, %s158
    %p169 = scmp.eq.s32.totalorder %s16, 0
    %p170 = por %p168, %p169
    %p171 = scmp.ne.s32.totalorder %s157, %s158
    %p172 = scmp.eq.s32.totalorder %s17, 1
    %p173 = por %p171, %p172
    %p175 = scmp.ne.s32.totalorder %s158, %s174
    %p176 = scmp.eq.s32.totalorder %s17, 0
    %p177 = por %p175, %p176
    %p178 = scmp.le.s32.totalorder 1, %s11
    %p179 = scmp.lt.s32.totalorder %s11, 3
    %p180 = pnand %p178, %p179
    %p181 = pneg %p180
    // Predicated region
    $region9: #{basic_block_forward.4} parent=5 // pred_check
      _
    $region10: #{basic_block_forward.4} parent=5 // pred_check_branch
      %183 = sbr.rel (%p180) target = $region12
    $region11: #{basic_block_forward.4} parent=5 // pred_region
      %s184 = ssub.s32 %s11, 1
      // Predicated region
      $region13: #{basic_block_forward.4} parent=11 // pred_check
        %p185 = pneg %p72
      $region14: #{basic_block_forward.4} parent=11 // pred_check_branch
        %187 = sbr.rel (%p185) target = $region16
      $region15: #{basic_block_forward.4} parent=11 // pred_region
        _
      $region16: #{basic_block_forward.4} parent=11 // pred_fallthru
        _
      // Predicated region
      $region17: #{basic_block_forward.4} parent=11 // pred_check
        %p188 = pneg %p93
      $region18: #{basic_block_forward.4} parent=11 // pred_check_branch
        %190 = sbr.rel (%p188) target = $region20
      $region19: #{basic_block_forward.4} parent=11 // pred_region
        _
      $region20: #{basic_block_forward.4} parent=11 // pred_fallthru
        _
      // Predicated region
      $region21: #{basic_block_forward.4} parent=11 // pred_check
        %p191 = pneg %p114
      $region22: #{basic_block_forward.4} parent=11 // pred_check_branch
        %193 = sbr.rel (%p191) target = $region24
      $region23: #{basic_block_forward.4} parent=11 // pred_region
        _
      $region24: #{basic_block_forward.4} parent=11 // pred_fallthru
        _
    $region12: #{basic_block_forward.4} parent=5 // pred_fallthru
      _
    %p194 = scmp.lt.s32.totalorder %s11, 2
    // Predicated region
    $region25: #{basic_block_forward.4} parent=5 // pred_check
      %p195 = pneg %p194
    $region26: #{basic_block_forward.4} parent=5 // pred_check_branch
      %197 = sbr.rel (%p195) target = $region28
    $region27: #{basic_block_forward.4} parent=5 // pred_region
      // Predicated region
      $region29: #{basic_block_forward.4} parent=27 // pred_check
        %p198 = pneg %p45
      $region30: #{basic_block_forward.4} parent=27 // pred_check_branch
        %200 = sbr.rel (%p198) target = $region32
      $region31: #{basic_block_forward.4} parent=27 // pred_region
        %s201 = smul.u32 2, %s19
        %p202 = scmp.lt.s32.totalorder %s18, 1
        %s203 = scalar_select %p202, %s18, 1
        %p204 = scmp.lt.s32.totalorder %s201, 1
        %s205 = scalar_select %p204, %s201, 1
        %s206 = smul.addr %s203, 10
        %s207 = sadd.s32 %s205, %s206
        %s208 = smul.addr %s207, 4
        %s209 = scalar_lea.vmem %s0, %s208
        %s210 = smul.u32 2, %s19
      $region32: #{basic_block_forward.4} parent=27 // pred_fallthru
        _
      // Predicated region
      $region33: #{basic_block_forward.4} parent=27 // pred_check
        %p211 = pneg %p136
      $region34: #{basic_block_forward.4} parent=27 // pred_check_branch
        %213 = sbr.rel (%p211) target = $region36
      $region35: #{basic_block_forward.4} parent=27 // pred_region
        %s214 = smul.u32 2, %s19
        %p215 = scmp.lt.s32.totalorder %s18, 1
        %s216 = scalar_select %p215, %s18, 1
        %p217 = scmp.lt.s32.totalorder %s214, 1
        %s218 = scalar_select %p217, %s214, 1
        %s219 = smul.addr %s216, 2
        %s220 = sadd.s32 %s218, %s219
        %s221 = smul.addr %s220, 4
        %s222 = scalar_lea.vmem %s4, %s221
        %s223 = smul.u32 2, %s19
      $region36: #{basic_block_forward.4} parent=27 // pred_fallthru
        _
    $region28: #{basic_block_forward.4} parent=5 // pred_fallthru
      _
    %p224 = scmp.le.s32.totalorder 1, %s11
    %p225 = scmp.lt.s32.totalorder %s11, 3
    %p226 = pnand %p224, %p225
    %p227 = pneg %p226
    // Predicated region
    $region37: #{basic_block_forward.4} parent=5 // pred_check
      _
    $region38: #{basic_block_forward.4} parent=5 // pred_check_branch
      %229 = sbr.rel (%p226) target = $region40
    $region39: #{basic_block_forward.4} parent=5 // pred_region
      %s230 = ssub.s32 %s11, 1
      %s231 = smul.u32 2, %s21
      %p232 = scmp.lt.s32.totalorder %s20, 1
      %s233 = scalar_select %p232, %s20, 1
      %p234 = scmp.lt.s32.totalorder %s231, 1
      %s235 = scalar_select %p234, %s231, 1
      %s236 = smul.addr %s233, 10
      %s237 = sadd.s32 %s235, %s236
      %s238 = smul.addr %s237, 4
      %s239 = scalar_lea.vmem %s0, %s238
      %p240 = pneg %p51
      %p241 = pneg %p48
      %p242 = pneg %p72
      %p243 = pneg %p69
      %p244 = pneg %p93
      %p245 = pneg %p90
      %p246 = pneg %p114
      %p247 = pneg %p111
      %s248 = smul.u32 2, %s21
      %p249 = scmp.lt.s32.totalorder %s20, 1
      %s250 = scalar_select %p249, %s20, 1
      %p251 = scmp.lt.s32.totalorder %s248, 1
      %s252 = scalar_select %p251, %s248, 1
      %s253 = smul.addr %s250, 2
      %s254 = sadd.s32 %s252, %s253
      %s255 = smul.addr %s254, 4
      %s256 = scalar_lea.vmem %s4, %s255
      %p257 = pneg %p142
      %p258 = pneg %p139
      %p259 = pneg %p170
      %p260 = pneg %p167
      %s261 = smul.u32 2, %s21
      %p262 = scmp.lt.s32.totalorder %s20, 1
      %s263 = scalar_select %p262, %s20, 1
      %p264 = scmp.lt.s32.totalorder %s261, 1
      %s265 = scalar_select %p264, %s261, 1
      %s266 = smul.addr %s263, 2
      %s267 = sadd.s32 %s265, %s266
      %s268 = smul.addr %s267, 2
      %s269 = scalar_lea.vmem %s5, %s268
      %s270 = smul.u32 2, %s21
      %p271 = scmp.lt.s32.totalorder %s20, 1
      %s272 = scalar_select %p271, %s20, 1
      %p273 = scmp.lt.s32.totalorder %s270, 1
      %s274 = scalar_select %p273, %s270, 1
      %s275 = smul.addr %s272, 10
      %s276 = sadd.s32 %s274, %s275
      %s277 = smul.addr %s276, 4
      %s278 = scalar_lea.vmem %s0, %s277
      %s279 = smul.u32 2, %s21
      %s280 = smul.u32 2, %s21
      %p281 = scmp.lt.s32.totalorder %s20, 1
      %s282 = scalar_select %p281, %s20, 1
      %p283 = scmp.lt.s32.totalorder %s280, 1
      %s284 = scalar_select %p283, %s280, 1
      %s285 = smul.addr %s282, 2
      %s286 = sadd.s32 %s284, %s285
      %s287 = smul.addr %s286, 4
      %s288 = scalar_lea.vmem %s4, %s287
      %s289 = smul.u32 2, %s21
      %s290 = smul.u32 2, %s21
      %p291 = scmp.lt.s32.totalorder %s20, 1
      %s292 = scalar_select %p291, %s20, 1
      %p293 = scmp.lt.s32.totalorder %s290, 1
      %s294 = scalar_select %p293, %s290, 1
      %s295 = smul.addr %s292, 2
      %s296 = sadd.s32 %s294, %s295
      %s297 = smul.addr %s296, 2
      %s298 = scalar_lea.vmem %s5, %s297
      %s299 = smul.u32 2, %s21
      %v301 = vld [vmem:[%s1] sm:$0x3]
      %v302 = vld [vmem:[%s278] sm:$0xff]
      %v303 = vld [vmem:[%s278 + $0x8] sm:$0xff]
      %v304 = vld [vmem:[%s278 + $0x10] sm:$0xff]
      %v305 = vld [vmem:[%s278 + $0x18] sm:$0xff]
      %v306 = vld [vmem:[%s278 + $0x20] sm:$0x33]
      %v312 = vunpack.c.l.b16 %v302
      %v313 = vunpack.c.h.b16 %v302
      %v314 = vunpack.c.l.b16 %v303
      %v315 = vunpack.c.h.b16 %v303
      %v316 = vunpack.c.l.b16 %v304
      %v317 = vunpack.c.h.b16 %v304
      %v318 = vunpack.c.l.b16 %v305
      %v319 = vunpack.c.h.b16 %v305
      %v320 = vunpack.c.l.b16 %v306
      %v321 = vunpack.c.h.b16 %v306
      %v322 = vpack.c.b16 %v314, %v312
      %v323 = vpack.c.b16 %v315, %v313
      %v324 = vpack.c.b16 %v318, %v316
      %v325 = vpack.c.b16 %v319, %v317
      %v326 = vpack.c.b16 %v320, %v320
      %v327 = vpack.c.b16 %v321, %v321
      %vm332 = vcmask 293888
      %v334 = vsel %vm332, %v301, 0
      %vm336 = vcmask 1041408
      %v338 = vsel %vm336, %v326, 0
      %v341 = vsel %vm336, %v327, 0
      %343 = vmatprep.subr.bf16.mxu0 %v323
      %344 = vmatpush1.bf16.msra.mxu0 %v322
      %345 = vmatprep.subr.bf16.mxu0 %v325
      %346 = vmatpush1.bf16.msra.mxu0 %v324
      %347 = vmatprep.subr.bf16.mxu0 %v341
      %348 = vmatpush1.bf16.msra.mxu0 %v338
      %349 = vmatprep.subr.bf16.mxu0 0
      %350 = vmatpush1.bf16.msra.mxu0 0
      %351 = vmatprep.subr.bf16.mxu0 0
      %352 = vmatpush1.bf16.msra.mxu0 0
      %353 = vmatprep.subr.bf16.mxu0 0
      %354 = vmatpush1.bf16.msra.mxu0 0
      %355 = vmatprep.subr.bf16.mxu0 0
      %356 = vmatpush1.bf16.msra.mxu0 0
      %357 = vmatprep.subr.bf16.mxu0 0
      %358 = vmatpush1.bf16.msra.mxu0 0
      %359 = vmatprep.subr.bf16.mxu0 0
      %360 = vmatpush1.bf16.msra.mxu0 0
      %361 = vmatprep.subr.bf16.mxu0 0
      %362 = vmatpush1.bf16.msra.mxu0 0
      %363 = vmatprep.subr.bf16.mxu0 0
      %364 = vmatpush1.bf16.msra.mxu0 0
      %365 = vmatprep.subr.bf16.mxu0 0
      %366 = vmatpush1.bf16.msra.mxu0 0
      %367 = vmatprep.subr.bf16.mxu0 0
      %368 = vmatpush1.bf16.msra.mxu0 0
      %369 = vmatprep.subr.bf16.mxu0 0
      %370 = vmatpush1.bf16.msra.mxu0 0
      %371 = vmatprep.subr.bf16.mxu0 0
      %372 = vmatpush1.bf16.msra.mxu0 0
      %373 = vmatprep.subr.bf16.mxu0 0
      %374 = vmatpush1.bf16.msra.mxu0 0
      %375 = vmatprep.mubr.bf16.mxu0 0
      %376 = vmatmul.mubr.bf16.gmra.mrb[0].mxu0 %v334
      %v377 = vpop.f32.mrb[0].mxu0
      %v378 = vadd.f32 0.0, %v377
      %v379 = vpop.f32.mrb[0].mxu0
      %v380 = vadd.f32 0.0, %v379
      %v381 = vpop.f32.mrb[0].mxu0
      %v382 = vpop.f32.mrb[0].mxu0
      %383 = vdwg.mxu0
      %v384 = vld [vmem:[%s2] sm:$0xf]
      %386 = vset.pattern.permute.xlu0 0
      %387 = vperm.xlu0 %386, %v384
      %v388 = vpop.permute.xlu0 %387
      %v390 = vmul.f32 %v378, %v388
      %v391 = vmul.f32 %v380, %v388
      %v392 = vld [vmem:[%s3] sm:$0xf]
      %394 = vset.pattern.permute.xlu0 0
      %395 = vperm.xlu0 %394, %v392
      %v396 = vpop.permute.xlu0 %395
      %v398 = vadd.f32 %v390, %v396
      %v399 = vadd.f32 %v391, %v396
      %v400 = vmax.f32 %v398, 0.0
      %v401 = vmax.f32 %v399, 0.0
      %v402 = vld [vmem:[%s288] sm:$0xff]
      %v404 = vcombine.high %v402, %v402
      %v406 = vadd.f32 %v400, %v402
      %v407 = vadd.f32 %v401, %v404
      %v408 = vpack.c.bf16 %v406, %v406
      %v409 = vpack.c.bf16 %v407, %v407
      %v412 = vcombine.low %v408, %v409
      %v414 = vunpack.c.l.s4 1983009808
      %v415 = vunpack.c.0.s8 %v414
      %v416 = vlaneseq
      %v417 = vshrl.u32 %v416, 7
      %v418 = vsub.s32 %v415, %v417
      %v419 = vrot.slane %v412, %v418
      %421 = vst [vmem:[%s298] sm:$0xf] %v419
      %s422 = smul.u32 2, %s21
      %p423 = scmp.lt.s32.totalorder %s20, 1
      %s424 = scalar_select %p423, %s20, 1
      %p425 = scmp.lt.s32.totalorder %s422, 1
      %s426 = scalar_select %p425, %s422, 1
      %s427 = smul.addr %s424, 2
      %s428 = sadd.s32 %s426, %s427
      %s429 = smul.addr %s428, 2
      %s430 = scalar_lea.vmem %s5, %s429
      // Predicated region
      $region41: #{basic_block_forward.4} parent=39 // pred_check
        %p431 = pneg %p167
      $region42: #{basic_block_forward.4} parent=39 // pred_check_branch
        %433 = sbr.rel (%p431) target = $region44
      $region43: #{basic_block_forward.4} parent=39 // pred_region
        %s434 = smul.u32 2, %s21
      $region44: #{basic_block_forward.4} parent=39 // pred_fallthru
        _
    $region40: #{basic_block_forward.4} parent=5 // pred_fallthru
      _
    %p435 = scmp.le.s32.totalorder 2, %s11
    // Predicated region
    $region45: #{basic_block_forward.4} parent=5 // pred_check
      %p436 = pneg %p435
    $region46: #{basic_block_forward.4} parent=5 // pred_check_branch
      %438 = sbr.rel (%p436) target = $region48
    $region47: #{basic_block_forward.4} parent=5 // pred_region
      %s439 = ssub.s32 %s11, 2
      // Predicated region
      $region49: #{basic_block_forward.4} parent=47 // pred_check
        %p440 = pneg %p173
      $region50: #{basic_block_forward.4} parent=47 // pred_check_branch
        %442 = sbr.rel (%p440) target = $region52
      $region51: #{basic_block_forward.4} parent=47 // pred_region
        %s443 = smul.u32 2, %s23
        %p444 = scmp.lt.s32.totalorder %s22, 1
        %s445 = scalar_select %p444, %s22, 1
        %p446 = scmp.lt.s32.totalorder %s443, 1
        %s447 = scalar_select %p446, %s443, 1
        %s448 = smul.addr %s445, 2
        %s449 = sadd.s32 %s447, %s448
        %s450 = smul.addr %s449, 2
        %s451 = scalar_lea.vmem %s5, %s450
      $region52: #{basic_block_forward.4} parent=47 // pred_fallthru
        _
    $region48: #{basic_block_forward.4} parent=5 // pred_fallthru
      _
  $region6: #{basic_block_forward.4} parent=0 // loop_footer
    %s15 = sadd.s32 1, %s11
  $region7: #{basic_block_forward.4} parent=0 // loop_footer_branch
    %10 = sbr.rel target = $region3
  $region8: #{basic_block_forward.4} parent=0 // loop_exit
    _

// kernel: basic_block_forward.5
$region0: #{basic_block_forward.5}
  #allocation0 [shape = 'u32[]', space=smem, size = 0x4, offset = 0x4, fixed_abs, tag = 'smem constant byte address 0x4 - core index']
  #allocation1 [shape = 'u32[144,128]{1,0:T(1,128)}', space=vmem, size = 0x12000, scoped, tag = 'internal scratch']
  %s0 = inlined_call_operand.vmem [shape: bf16[36,128], index: 0, kind: input, shape index: {}]
  %s1 = inlined_call_operand.vmem [shape: bf16[8,36], index: 1, kind: input, shape index: {}]
  %s2 = inlined_call_operand.vmem [shape: f32[8,1], index: 2, kind: input, shape index: {}]
  %s3 = inlined_call_operand.vmem [shape: f32[8,128], index: 3, kind: output, shape index: {}]
  %s4 = sld [smem:[#allocation0]]
  $region22: #{basic_block_forward.5} parent=0
    _
  %s6 = ssub.s32 1, %s4
  %s7 = scalar_select 0, %s6, %s4
  // Predicated region
  $region2: #{basic_block_forward.5} parent=0 // pred_check
    _
  $region3: #{basic_block_forward.5} parent=0 // pred_check_branch
    %9 = sbr.rel (0) target = $region5
  $region4: #{basic_block_forward.5} parent=0 // pred_region
    _
  $region5: #{basic_block_forward.5} parent=0 // pred_fallthru
    _
  // Predicated region
  $region6: #{basic_block_forward.5} parent=0 // pred_check
    _
  $region7: #{basic_block_forward.5} parent=0 // pred_check_branch
    %11 = sbr.rel (0) target = $region9
  $region8: #{basic_block_forward.5} parent=0 // pred_region
    _
  $region9: #{basic_block_forward.5} parent=0 // pred_fallthru
    _
  // Predicated region
  $region10: #{basic_block_forward.5} parent=0 // pred_check
    _
  $region11: #{basic_block_forward.5} parent=0 // pred_check_branch
    %13 = sbr.rel (0) target = $region13
  $region12: #{basic_block_forward.5} parent=0 // pred_region
    _
  $region13: #{basic_block_forward.5} parent=0 // pred_fallthru
    _
  %v15 = vld [vmem:[%s1] sm:$0xf]
  %v16 = vld [vmem:[%s0] sm:$0xf]
  %v17 = vld [vmem:[%s0 + $0x4] sm:$0xf]
  %v18 = vld [vmem:[%s0 + $0x8] sm:$0xf]
  %v19 = vld [vmem:[%s0 + $0xc] sm:$0xf]
  %v20 = vld [vmem:[%s0 + $0x10] sm:$0x3]
  %v21 = vld [vmem:[%s2] sm:$0xff]
  %23 = vset.pattern.permute.xlu0 0
  %24 = vperm.xlu0 %23, %v21
  %v25 = vpop.permute.xlu0 %24
  %v32 = vunpack.c.l.b16 %v16
  %v33 = vunpack.c.l.b16 %v17
  %v34 = vunpack.c.l.b16 %v18
  %v35 = vunpack.c.l.b16 %v19
  %v36 = vunpack.c.l.b16 %v20
  %v37 = vpack.c.b16 %v33, %v32
  %v38 = vpack.c.b16 %v35, %v34
  %v39 = vpack.c.b16 %v36, %v36
  %vm42 = vcmask 293888
  %v44 = vsel %vm42, %v15, 0
  %vm46 = vcmask 1041408
  %v48 = vsel %vm46, %v39, 0
  %50 = vmatprep.subr.bf16.mxu0 0
  %51 = vmatpush1.bf16.msra.mxu0 %v37
  %52 = vmatprep.subr.bf16.mxu0 0
  %53 = vmatpush1.bf16.msra.mxu0 %v38
  %54 = vmatprep.subr.bf16.mxu0 0
  %55 = vmatpush1.bf16.msra.mxu0 %v48
  %56 = vmatprep.subr.bf16.mxu0 0
  %57 = vmatpush1.bf16.msra.mxu0 0
  %58 = vmatprep.subr.bf16.mxu0 0
  %59 = vmatpush1.bf16.msra.mxu0 0
  %60 = vmatprep.subr.bf16.mxu0 0
  %61 = vmatpush1.bf16.msra.mxu0 0
  %62 = vmatprep.subr.bf16.mxu0 0
  %63 = vmatpush1.bf16.msra.mxu0 0
  %64 = vmatprep.subr.bf16.mxu0 0
  %65 = vmatpush1.bf16.msra.mxu0 0
  %66 = vmatprep.subr.bf16.mxu0 0
  %67 = vmatpush1.bf16.msra.mxu0 0
  %68 = vmatprep.subr.bf16.mxu0 0
  %69 = vmatpush1.bf16.msra.mxu0 0
  %70 = vmatprep.subr.bf16.mxu0 0
  %71 = vmatpush1.bf16.msra.mxu0 0
  %72 = vmatprep.subr.bf16.mxu0 0
  %73 = vmatpush1.bf16.msra.mxu0 0
  %74 = vmatprep.subr.bf16.mxu0 0
  %75 = vmatpush1.bf16.msra.mxu0 0
  %76 = vmatprep.subr.bf16.mxu0 0
  %77 = vmatpush1.bf16.msra.mxu0 0
  %78 = vmatprep.subr.bf16.mxu0 0
  %79 = vmatpush1.bf16.msra.mxu0 0
  %80 = vmatprep.subr.bf16.mxu0 0
  %81 = vmatpush1.bf16.msra.mxu0 0
  %82 = vmatprep.mubr.bf16.mxu0 0
  %83 = vmatmul.mubr.bf16.gmra.mrb[0].mxu0 %v44
  %v84 = vpop.f32.mrb[0].mxu0
  %v85 = vadd.f32 %v25, %v84
  %v86 = vpop.f32.mrb[0].mxu0
  %v87 = vpop.f32.mrb[0].mxu0
  %v88 = vpop.f32.mrb[0].mxu0
  %89 = vdwg.mxu0
  %90 = vst [vmem:[%s3] sm:$0xff] %v85
  // Predicated region
  $region14: #{basic_block_forward.5} parent=0 // pred_check
    _
  $region15: #{basic_block_forward.5} parent=0 // pred_check_branch
    %92 = sbr.rel (0) target = $region17
  $region16: #{basic_block_forward.5} parent=0 // pred_region
    _
  $region17: #{basic_block_forward.5} parent=0 // pred_fallthru
    _
  // Predicated region
  $region18: #{basic_block_forward.5} parent=0 // pred_check
    _
  $region19: #{basic_block_forward.5} parent=0 // pred_check_branch
    %94 = sbr.rel (0) target = $region21
  $region20: #{basic_block_forward.5} parent=0 // pred_region
    _
  $region21: #{basic_block_forward.5} parent=0 // pred_fallthru
    _

</llo_original>
